<compile_context>
chip_gen: v7x
topology: tpu7x:2x2x1
jax: 0.10.0
libtpu: 0.0.40
codegen_flags: <defaults>
</compile_context>

<pallas_src>
from functools import partial

import jax
import jax.numpy as jnp
from jax.experimental import pallas as pl
from jax.experimental.pallas import tpu as pltpu

NUM_HEADS = 4
LN_EPS = 1e-5

# Bounds the per-step batch tile: keeps the in-kernel batched attention matmuls /
# unrolled code size manageable while the QKV/fc matmuls still see M up to 2048.
_MAX_TB = 256


# ----------------------------------------------------------------------------- kernel
def _graph_decoder_kernel(*refs, num_heads, has_mask, compute_dtype):
    if has_mask:
        (x_ref, bias_ref, wqkv_ref, wo_ref, w1_ref, w2_ref,
         hmask_ref, vecs_ref, out_ref) = refs
    else:
        (x_ref, wqkv_ref, wo_ref, w1_ref, w2_ref,
         hmask_ref, vecs_ref, out_ref) = refs
        bias_ref = None

    f32 = jnp.float32
    cdt = compute_dtype
    exact = jnp.dtype(cdt) == jnp.dtype(jnp.float32)

    TB, N, E = x_ref.shape
    Hd = w1_ref.shape[1]
    O = w2_ref.shape[1]
    H = num_heads
    M = TB * N

    vecs = vecs_ref[...]       # (8, P) f32: [bqkv | bo | b1 | b2 | gamma | beta | 0 | 0]
    hmask = hmask_ref[...]     # (H*N, E) 0/1 head-selection mask (compute dtype)

    # ---- fused QKV projection on the folded (TB*N, E) M-dim ----
    # (1/sqrt(D) is pre-folded into the q rows of Wqkv and into bq at pack time.)
    x2 = x_ref[...].reshape(M, E).astype(cdt)
    qkv = jnp.dot(x2, wqkv_ref[...], preferred_element_type=f32) + vecs[0:1, :3 * E]

    q = qkv[:, 0 * E:1 * E].reshape(TB, N, E).astype(cdt)
    k = qkv[:, 1 * E:2 * E].reshape(TB, N, E).astype(cdt)
    v = qkv[:, 2 * E:3 * E].reshape(TB, N, E).astype(cdt)

    # ---- all heads in one shot ----
    # Replicate q along a head-major query dim and zero the feature columns that do
    # not belong to each row's head; a single batched matmul then yields every
    # head's scores and one softmax pass covers all heads.
    q_exp = jnp.concatenate([q] * H, axis=1) * hmask                 # (TB, H*N, E)
    s = jnp.einsum("bqe,bke->bqk", q_exp, k,
                   preferred_element_type=f32)                       # (TB, H*N, N)
    if has_mask:
        s = s + bias_ref[...]                                        # (TB, 1, N) key bias
    # NOTE: a fully-masked row gives s_max = -inf -> NaN, like nn.MultiheadAttention.
    s_max = jnp.max(s, axis=-1, keepdims=True)
    p = jnp.exp(s - s_max)
    l = jnp.sum(p, axis=-1, keepdims=True)
    inv_l = (1.0 / l) if exact else pl.reciprocal(l, approx=True)
    inv_l = inv_l * (1.0 / N)              # fold the node-mean 1/N into the normalizer

    o = jnp.einsum("bqk,bke->bqe", p.astype(cdt), v,
                   preferred_element_type=f32)                       # (TB, H*N, E) f32

    # ---- node mean BEFORE the (linear) output projection ----
    # hmask keeps only each query row's own head columns (drops cross-head terms);
    # the sublane reduce over q = (head, node) realizes the exact mean over nodes.
    g = jnp.sum(o * inv_l * hmask, axis=1)                           # (TB, E) f32
    g = jnp.dot(g.astype(cdt), wo_ref[...],
                preferred_element_type=f32) + vecs[1:2, :E]          # (TB, E)

    # ---- fc1 -> ReLU -> fc2 (M-dim = TB) ----
    h1 = jnp.dot(g.astype(cdt), w1_ref[...], preferred_element_type=f32) + vecs[2:3, :Hd]
    h1 = jnp.maximum(h1, 0.0)
    h2 = jnp.dot(h1.astype(cdt), w2_ref[...], preferred_element_type=f32) + vecs[3:4, :O]

    # ---- LayerNorm over the last dim (f32, biased variance, eps=1e-5) ----
    mu = jnp.mean(h2, axis=-1, keepdims=True)
    var = jnp.mean((h2 - mu) ** 2, axis=-1, keepdims=True)
    y = (h2 - mu) * jax.lax.rsqrt(var + LN_EPS)
    y = y * vecs[4:5, :O] + vecs[5:6, :O]

    out_ref[...] = y.reshape(out_ref.shape).astype(out_ref.dtype)


# ----------------------------------------------------------------------------- wrapper
def _pick_tb(B, N, E, H, vmem_budget_bytes=16 * 1024 * 1024):
    """Batch tile: as large as the VMEM budget / compile-size ceiling allows.

    Prefers a single grid step (v5e/v6e: one TC, per-step overhead is pure loss)
    and splits into an even 2-step grid for v7x megacore only when each step
    still feeds the MXU with M = TB*N >= 256.
    """
    # rough per-batch-row f32 working set inside the kernel (x/qkv/q_exp/scores/o)
    per_row = 4 * (9 * N * E + 2 * H * N * E + 2 * H * N * N) + 1024
    cap = min(_MAX_TB, max(1, vmem_budget_bytes // per_row))
    divs = [d for d in range(1, B + 1) if B % d == 0 and d <= cap]
    tb = max(divs) if divs else 1
    half = B // 2
    if tb == B and B % 2 == 0 and half <= cap and half * N >= 256:
        tb = half                         # 2 parallel steps for v7x megacore
    return tb


def pack_graph_decoder_params(params, compute_dtype=jnp.bfloat16, num_heads=NUM_HEADS):
    """Host-side packing: fuse QKV (with 1/sqrt(D) folded into the q path),
    pre-transpose all weights, and pack the small vectors into one (8, P) stream."""
    E = params["wq"].shape[0]
    Hd = params["w1"].shape[0]
    O = params["w2"].shape[0]
    assert E % num_heads == 0
    scale = 1.0 / float(E // num_heads) ** 0.5

    wqkv_t = jnp.concatenate([params["wq"] * scale, params["wk"], params["wv"]],
                             axis=0).T                                    # (E, 3E)
    bqkv = jnp.concatenate([params["bq"].reshape(-1) * scale,
                            params["bk"].reshape(-1),
                            params["bv"].reshape(-1)])                    # (3E,)

    P = max(3 * E, Hd, O)
    P = ((P + 127) // 128) * 128          # lane-align the packed vector stream

    def row(vec, n):
        return jnp.pad(vec.reshape(-1).astype(jnp.float32), (0, P - n))

    zero = jnp.zeros((P,), jnp.float32)
    vecs = jnp.stack([row(bqkv, 3 * E), row(params["bo"], E),
                      row(params["b1"], Hd), row(params["b2"], O),
                      row(params["gamma"], O), row(params["beta"], O),
                      zero, zero], axis=0)                                # (8, P) f32

    return {
        "wqkv_t": wqkv_t.astype(compute_dtype),        # (E, 3E)
        "wo_t": params["wo"].T.astype(compute_dtype),  # (E, E)
        "w1_t": params["w1"].T.astype(compute_dtype),  # (E, Hd)
        "w2_t": params["w2"].T.astype(compute_dtype),  # (Hd, O)
        "vecs": vecs,
        "num_heads": num_heads,
        "compute_dtype": compute_dtype,
    }


def graph_decoder_forward(x, packed, mask=None, *, tile_b=None):
    """x: (B, N, E); mask: optional (B, N) bool, True = attend (module semantics)."""
    B, N, E = x.shape
    H = packed["num_heads"]
    O = packed["w2_t"].shape[1]
    cdt = packed["compute_dtype"]
    D = E // H

    TB = tile_b if tile_b is not None else _pick_tb(B, N, E, H)
    assert B % TB == 0, "batch must be divisible by the batch tile"
    grid = (B // TB,)
    has_mask = mask is not None

    # constant head-selection mask: hmask[h*N + n, h'*D + d] = 1 iff h == h'
    qrow_head = jnp.arange(H * N, dtype=jnp.int32) // N
    col_head = jnp.arange(E, dtype=jnp.int32) // D
    head_mask = (qrow_head[:, None] == col_head[None, :]).astype(cdt)     # (H*N, E)

    def const_spec(shape):
        nd = len(shape)
        return pl.BlockSpec(shape, lambda b, _nd=nd: (0,) * _nd)

    in_specs = [pl.BlockSpec((TB, N, E), lambda b: (b, 0, 0))]
    inputs = [x]                          # original dtype; cast in-kernel
    if has_mask:
        bias = jnp.where(mask.astype(bool), 0.0, -jnp.inf).astype(jnp.float32)
        inputs.append(bias.reshape(B, 1, N))
        in_specs.append(pl.BlockSpec((TB, 1, N), lambda b: (b, 0, 0)))

    consts = [packed["wqkv_t"], packed["wo_t"], packed["w1_t"],
              packed["w2_t"], head_mask, packed["vecs"]]
    in_specs += [const_spec(c.shape) for c in consts]
    inputs += consts

    kernel = partial(_graph_decoder_kernel, num_heads=H, has_mask=has_mask,
                     compute_dtype=cdt)

    out = pl.pallas_call(
        kernel,
        out_shape=jax.ShapeDtypeStruct((B // TB, TB, O), jnp.float32),
        grid=grid,
        in_specs=in_specs,
        out_specs=pl.BlockSpec((1, TB, O), lambda b: (b, 0, 0)),
        compiler_params=pltpu.CompilerParams(
            dimension_semantics=("parallel",),
            vmem_limit_bytes=32 * 1024 * 1024,
        ),
    )(*inputs)
    return out.reshape(B, O)


# ----------------------------------------------------------------------------- reference
def graph_decoder_reference(x, params, mask=None):
    """Pure-JAX f32 reference implementing the PyTorch semantics."""
    B, N, E = x.shape
    D = E // NUM_HEADS
    scale = 1.0 / (D ** 0.5)
    if mask is None:
        bias = jnp.zeros((B, 1, 1, N), jnp.float32)
    else:
        bias = jnp.where(mask.astype(bool), 0.0, -jnp.inf)[:, None, None, :]

    q = x @ params["wq"].T + params["bq"]
    k = x @ params["wk"].T + params["bk"]
    v = x @ params["wv"].T + params["bv"]
    q = q.reshape(B, N, NUM_HEADS, D).transpose(0, 2, 1, 3)
    k = k.reshape(B, N, NUM_HEADS, D).transpose(0, 2, 1, 3)
    v = v.reshape(B, N, NUM_HEADS, D).transpose(0, 2, 1, 3)
    s = jnp.einsum("bhqd,bhkd->bhqk", q, k) * scale + bias
    p = jax.nn.softmax(s, axis=-1)
    o = jnp.einsum("bhqk,bhkd->bhqd", p, v).transpose(0, 2, 1, 3).reshape(B, N, E)
    o = o @ params["wo"].T + params["bo"]
    g = o.mean(axis=1)
    g = jnp.maximum(g @ params["w1"].T + params["b1"][0], 0.0)
    g = g @ params["w2"].T + params["b2"][0]
    mu = g.mean(-1, keepdims=True)
    var = ((g - mu) ** 2).mean(-1, keepdims=True)
    return (g - mu) * jax.lax.rsqrt(var + LN_EPS) * params["gamma"][0] + params["beta"][0]


def init_params(key, input_dim, hidden_dim, output_dim):
    E, Hd, O = input_dim, hidden_dim, output_dim
    ks = jax.random.split(key, 12)
    scale = 0.1
    return {
        "wq": scale * jax.random.normal(ks[0], (E, E), jnp.float32),
        "bq": scale * jax.random.normal(ks[1], (1, E), jnp.float32),
        "wk": scale * jax.random.normal(ks[2], (E, E), jnp.float32),
        "bk": scale * jax.random.normal(ks[3], (1, E), jnp.float32),
        "wv": scale * jax.random.normal(ks[4], (E, E), jnp.float32),
        "bv": scale * jax.random.normal(ks[5], (1, E), jnp.float32),
        "wo": scale * jax.random.normal(ks[6], (E, E), jnp.float32),
        "bo": scale * jax.random.normal(ks[7], (1, E), jnp.float32),
        "w1": scale * jax.random.normal(ks[8], (Hd, E), jnp.float32),
        "b1": scale * jax.random.normal(ks[9], (1, Hd), jnp.float32),
        "w2": scale * jax.random.normal(ks[10], (O, Hd), jnp.float32),
        "b2": scale * jax.random.normal(ks[11], (1, O), jnp.float32),
        "gamma": jnp.ones((1, O), jnp.float32),   # nn.LayerNorm default init
        "beta": jnp.zeros((1, O), jnp.float32),
    }


def _quantize_params(params, dtype):
    q = dict(params)
    for name in ("wq", "wk", "wv", "wo", "w1", "w2"):
        q[name] = params[name].astype(dtype).astype(jnp.float32)
    return q


if __name__ == "__main__":
    B, N, E, Hd, O = 4, 8, 32, 32, 32   # batch, num_nodes, input_dim, hidden_dim, output_dim
    key = jax.random.PRNGKey(0)
    k_x, k_p, k_x2 = jax.random.split(key, 3)
    x = jax.random.normal(k_x, (B, N, E), jnp.float32)
    params = init_params(k_p, E, Hd, O)

    ref_f32 = graph_decoder_reference(x, params, mask=None)

    # --- exact (f32 compute) path vs f32 reference ---
    packed_f32 = pack_graph_decoder_params(params, compute_dtype=jnp.float32)
    out_f32 = jax.block_until_ready(graph_decoder_forward(x, packed_f32, mask=None))
    assert out_f32.shape == (B, O)
    assert jnp.allclose(out_f32, ref_f32, atol=1e-2, rtol=1e-2), (
        f"f32 path max abs err {jnp.max(jnp.abs(out_f32 - ref_f32))}")

    # --- default bf16-MXU path vs reference on bf16-rounded weights/inputs ---
    packed_bf16 = pack_graph_decoder_params(params, compute_dtype=jnp.bfloat16)
    x_q = x.astype(jnp.bfloat16).astype(jnp.float32)
    params_q = _quantize_params(params, jnp.bfloat16)

    out_bf16 = jax.block_until_ready(graph_decoder_forward(x, packed_bf16, mask=None))
    ref_q = graph_decoder_reference(x_q, params_q, mask=None)
    assert jnp.allclose(out_bf16, ref_q, atol=3e-2, rtol=3e-2), (
        f"bf16 path max abs err {jnp.max(jnp.abs(out_bf16 - ref_q))}")

    # --- masked path (each row keeps at least one attended node) ---
    mask = jnp.array([
        [True, True, True, True, True, True, True, True],
        [True, True, True, True, True, False, False, False],
        [True, False, True, False, True, False, True, False],
        [False, False, False, False, False, False, False, True],
    ])
    out_mask = jax.block_until_ready(graph_decoder_forward(x, packed_bf16, mask=mask))
    ref_mask = graph_decoder_reference(x_q, params_q, mask=mask)
    assert jnp.allclose(out_mask, ref_mask, atol=3e-2, rtol=3e-2), (
        f"masked path max abs err {jnp.max(jnp.abs(out_mask - ref_mask))}")

    # --- larger batch exercising the multi-step (v7x megacore) grid path ---
    B2 = 64
    x_big = jax.random.normal(k_x2, (B2, N, E), jnp.float32)
    out_big = jax.block_until_ready(graph_decoder_forward(x_big, packed_bf16, mask=None))
    ref_big = graph_decoder_reference(
        x_big.astype(jnp.bfloat16).astype(jnp.float32), params_q, mask=None)
    assert out_big.shape == (B2, O)
    assert jnp.allclose(out_big, ref_big, atol=3e-2, rtol=3e-2), (
        f"large-batch path max abs err {jnp.max(jnp.abs(out_big - ref_big))}")

    print("KERNEL_OK")
</pallas_src>

<mosaic_0001>
module attributes {stable_mosaic.version = 11 : i64} {
  func.func @_graph_decoder_kernel(%arg0: i32, %arg1: memref<4x8x32xf32, #tpu.memory_space<vmem>>, %arg2: memref<32x96xf32, #tpu.memory_space<vmem>>, %arg3: memref<32x32xf32, #tpu.memory_space<vmem>>, %arg4: memref<32x32xf32, #tpu.memory_space<vmem>>, %arg5: memref<32x32xf32, #tpu.memory_space<vmem>>, %arg6: memref<32x32xf32, #tpu.memory_space<vmem>>, %arg7: memref<8x128xf32, #tpu.memory_space<vmem>>, %arg8: memref<1x4x32xf32, #tpu.memory_space<vmem>>) attributes {dimension_semantics = [#tpu.dimension_semantics<parallel>], iteration_bounds = array<i64: 1>, scalar_prefetch = 0 : i64, scratch_operands = 0 : i64, tpu.core_type = #tpu.core_type<tc>, window_params = [{transform_indices = @transform_0, window_bounds = array<i64: 4, 8, 32>}, {pipeline_mode = #tpu.pipeline_mode<synchronous>, transform_indices = @transform_1, window_bounds = array<i64: 32, 96>}, {pipeline_mode = #tpu.pipeline_mode<synchronous>, transform_indices = @transform_2, window_bounds = array<i64: 32, 32>}, {pipeline_mode = #tpu.pipeline_mode<synchronous>, transform_indices = @transform_3, window_bounds = array<i64: 32, 32>}, {pipeline_mode = #tpu.pipeline_mode<synchronous>, transform_indices = @transform_4, window_bounds = array<i64: 32, 32>}, {pipeline_mode = #tpu.pipeline_mode<synchronous>, transform_indices = @transform_5, window_bounds = array<i64: 32, 32>}, {pipeline_mode = #tpu.pipeline_mode<synchronous>, transform_indices = @transform_6, window_bounds = array<i64: 8, 128>}, {transform_indices = @transform_7, window_bounds = array<i64: 1, 4, 32>}]} {
    %c0 = arith.constant 0 : index
    %c0_0 = arith.constant 0 : index
    %0 = vector.load %arg7[%c0, %c0_0] : memref<8x128xf32, #tpu.memory_space<vmem>>, vector<8x128xf32>
    %c0_1 = arith.constant 0 : index
    %c0_2 = arith.constant 0 : index
    %1 = vector.load %arg6[%c0_1, %c0_2] : memref<32x32xf32, #tpu.memory_space<vmem>>, vector<32x32xf32>
    %c0_3 = arith.constant 0 : index
    %c0_4 = arith.constant 0 : index
    %c0_5 = arith.constant 0 : index
    %2 = vector.load %arg1[%c0_3, %c0_4, %c0_5] : memref<4x8x32xf32, #tpu.memory_space<vmem>>, vector<4x8x32xf32>
    %3 = vector.shape_cast %2 : vector<4x8x32xf32> to vector<32x32xf32>
    %c0_6 = arith.constant 0 : index
    %c0_7 = arith.constant 0 : index
    %4 = vector.load %arg2[%c0_6, %c0_7] : memref<32x96xf32, #tpu.memory_space<vmem>>, vector<32x96xf32>
    %cst = arith.constant dense<0.000000e+00> : vector<32x96xf32>
    %5 = tpu.matmul %3, %4, %cst {dimension_numbers = #tpu.dot_dimension_numbers<[1], [0], [0], [1], [0, 0, 1, 1], [], []>} : vector<32x32xf32>, vector<32x96xf32>, vector<32x96xf32> -> vector<32x96xf32>
    %6 = vector.extract_strided_slice %0 {offsets = [0, 0], sizes = [1, 96], strides = [1, 1]} : vector<8x128xf32> to vector<1x96xf32>
    %7 = vector.broadcast %6 : vector<1x96xf32> to vector<32x96xf32>
    %8 = arith.addf %5, %7 : vector<32x96xf32>
    %9 = vector.extract_strided_slice %8 {offsets = [0, 0], sizes = [32, 32], strides = [1, 1]} : vector<32x96xf32> to vector<32x32xf32>
    %10 = vector.shape_cast %9 : vector<32x32xf32> to vector<4x8x32xf32>
    %11 = vector.extract_strided_slice %8 {offsets = [0, 32], sizes = [32, 32], strides = [1, 1]} : vector<32x96xf32> to vector<32x32xf32>
    %12 = vector.shape_cast %11 : vector<32x32xf32> to vector<4x8x32xf32>
    %13 = vector.extract_strided_slice %8 {offsets = [0, 64], sizes = [32, 32], strides = [1, 1]} : vector<32x96xf32> to vector<32x32xf32>
    %14 = vector.shape_cast %13 : vector<32x32xf32> to vector<4x8x32xf32>
    %15 = tpu.concatenate %10, %10, %10, %10 in 1 : vector<4x8x32xf32>, vector<4x8x32xf32>, vector<4x8x32xf32>, vector<4x8x32xf32> -> vector<4x32x32xf32>
    %16 = vector.shape_cast %1 : vector<32x32xf32> to vector<1x32x32xf32>
    %17 = vector.broadcast %16 : vector<1x32x32xf32> to vector<4x32x32xf32>
    %18 = arith.mulf %15, %17 : vector<4x32x32xf32>
    "tpu.trace_start"() <{level = 10 : i32, message = "bqe,bke->bqk"}> : () -> ()
    %cst_8 = arith.constant dense<0.000000e+00> : vector<4x32x8xf32>
    %19 = tpu.matmul %18, %12, %cst_8 {dimension_numbers = #tpu.dot_dimension_numbers<[2], [2], [1], [1], [0, 0, 0, 1, 1, 1], [0], [0]>} : vector<4x32x32xf32>, vector<4x8x32xf32>, vector<4x32x8xf32> -> vector<4x32x8xf32>
    "tpu.trace_stop"() : () -> ()
    %cst_9 = arith.constant dense<0xFF800000> : vector<4x32xf32>
    %20 = vector.multi_reduction <maximumf>, %19, %cst_9 [2] : vector<4x32x8xf32> to vector<4x32xf32>
    %21 = vector.shape_cast %20 : vector<4x32xf32> to vector<4x32x1xf32>
    %22 = vector.broadcast %21 : vector<4x32x1xf32> to vector<4x32x8xf32>
    %23 = arith.subf %19, %22 : vector<4x32x8xf32>
    %24 = math.exp %23 : vector<4x32x8xf32>
    %cst_10 = arith.constant dense<0.000000e+00> : vector<4x32xf32>
    %25 = vector.multi_reduction <add>, %24, %cst_10 [2] : vector<4x32x8xf32> to vector<4x32xf32>
    %26 = vector.shape_cast %25 : vector<4x32xf32> to vector<4x32x1xf32>
    %cst_11 = arith.constant 1.000000e+00 : f32
    %27 = vector.broadcast %cst_11 : f32 to vector<4x32x1xf32>
    %28 = arith.divf %27, %26 : vector<4x32x1xf32>
    %cst_12 = arith.constant 1.250000e-01 : f32
    %29 = vector.broadcast %cst_12 : f32 to vector<4x32x1xf32>
    %30 = arith.mulf %28, %29 : vector<4x32x1xf32>
    "tpu.trace_start"() <{level = 10 : i32, message = "bqk,bke->bqe"}> : () -> ()
    %cst_13 = arith.constant dense<0.000000e+00> : vector<4x32x32xf32>
    %31 = tpu.matmul %24, %14, %cst_13 {dimension_numbers = #tpu.dot_dimension_numbers<[2], [1], [1], [2], [0, 0, 0, 1, 1, 2], [0], [0]>} : vector<4x32x8xf32>, vector<4x8x32xf32>, vector<4x32x32xf32> -> vector<4x32x32xf32>
    "tpu.trace_stop"() : () -> ()
    %32 = vector.broadcast %30 : vector<4x32x1xf32> to vector<4x32x32xf32>
    %33 = arith.mulf %31, %32 : vector<4x32x32xf32>
    %34 = vector.shape_cast %1 : vector<32x32xf32> to vector<1x32x32xf32>
    %35 = vector.broadcast %34 : vector<1x32x32xf32> to vector<4x32x32xf32>
    %36 = arith.mulf %33, %35 : vector<4x32x32xf32>
    %cst_14 = arith.constant dense<0.000000e+00> : vector<4x32xf32>
    %37 = vector.multi_reduction <add>, %36, %cst_14 [1] : vector<4x32x32xf32> to vector<4x32xf32>
    %c0_15 = arith.constant 0 : index
    %c0_16 = arith.constant 0 : index
    %38 = vector.load %arg3[%c0_15, %c0_16] : memref<32x32xf32, #tpu.memory_space<vmem>>, vector<32x32xf32>
    %cst_17 = arith.constant dense<0.000000e+00> : vector<4x32xf32>
    %39 = tpu.matmul %37, %38, %cst_17 {dimension_numbers = #tpu.dot_dimension_numbers<[1], [0], [0], [1], [0, 0, 1, 1], [], []>} : vector<4x32xf32>, vector<32x32xf32>, vector<4x32xf32> -> vector<4x32xf32>
    %40 = vector.extract_strided_slice %0 {offsets = [1, 0], sizes = [1, 32], strides = [1, 1]} : vector<8x128xf32> to vector<1x32xf32>
    %41 = vector.broadcast %40 : vector<1x32xf32> to vector<4x32xf32>
    %42 = arith.addf %39, %41 : vector<4x32xf32>
    %c0_18 = arith.constant 0 : index
    %c0_19 = arith.constant 0 : index
    %43 = vector.load %arg4[%c0_18, %c0_19] : memref<32x32xf32, #tpu.memory_space<vmem>>, vector<32x32xf32>
    %cst_20 = arith.constant dense<0.000000e+00> : vector<4x32xf32>
    %44 = tpu.matmul %42, %43, %cst_20 {dimension_numbers = #tpu.dot_dimension_numbers<[1], [0], [0], [1], [0, 0, 1, 1], [], []>} : vector<4x32xf32>, vector<32x32xf32>, vector<4x32xf32> -> vector<4x32xf32>
    %45 = vector.extract_strided_slice %0 {offsets = [2, 0], sizes = [1, 32], strides = [1, 1]} : vector<8x128xf32> to vector<1x32xf32>
    %46 = vector.broadcast %45 : vector<1x32xf32> to vector<4x32xf32>
    %47 = arith.addf %44, %46 : vector<4x32xf32>
    %cst_21 = arith.constant 0.000000e+00 : f32
    %48 = vector.broadcast %cst_21 : f32 to vector<4x32xf32>
    %49 = arith.maximumf %47, %48 : vector<4x32xf32>
    %c0_22 = arith.constant 0 : index
    %c0_23 = arith.constant 0 : index
    %50 = vector.load %arg5[%c0_22, %c0_23] : memref<32x32xf32, #tpu.memory_space<vmem>>, vector<32x32xf32>
    %cst_24 = arith.constant dense<0.000000e+00> : vector<4x32xf32>
    %51 = tpu.matmul %49, %50, %cst_24 {dimension_numbers = #tpu.dot_dimension_numbers<[1], [0], [0], [1], [0, 0, 1, 1], [], []>} : vector<4x32xf32>, vector<32x32xf32>, vector<4x32xf32> -> vector<4x32xf32>
    %52 = vector.extract_strided_slice %0 {offsets = [3, 0], sizes = [1, 32], strides = [1, 1]} : vector<8x128xf32> to vector<1x32xf32>
    %53 = vector.broadcast %52 : vector<1x32xf32> to vector<4x32xf32>
    %54 = arith.addf %51, %53 : vector<4x32xf32>
    %cst_25 = arith.constant dense<0.000000e+00> : vector<4xf32>
    %55 = vector.multi_reduction <add>, %54, %cst_25 [1] : vector<4x32xf32> to vector<4xf32>
    %56 = vector.shape_cast %55 : vector<4xf32> to vector<4x1xf32>
    %cst_26 = arith.constant 3.200000e+01 : f32
    %57 = vector.broadcast %cst_26 : f32 to vector<4x1xf32>
    %58 = arith.divf %56, %57 : vector<4x1xf32>
    %59 = vector.broadcast %58 : vector<4x1xf32> to vector<4x32xf32>
    %60 = arith.subf %54, %59 : vector<4x32xf32>
    %61 = arith.mulf %60, %60 : vector<4x32xf32>
    %cst_27 = arith.constant dense<0.000000e+00> : vector<4xf32>
    %62 = vector.multi_reduction <add>, %61, %cst_27 [1] : vector<4x32xf32> to vector<4xf32>
    %63 = vector.shape_cast %62 : vector<4xf32> to vector<4x1xf32>
    %cst_28 = arith.constant 3.200000e+01 : f32
    %64 = vector.broadcast %cst_28 : f32 to vector<4x1xf32>
    %65 = arith.divf %63, %64 : vector<4x1xf32>
    %66 = vector.broadcast %58 : vector<4x1xf32> to vector<4x32xf32>
    %67 = arith.subf %54, %66 : vector<4x32xf32>
    %cst_29 = arith.constant 9.99999974E-6 : f32
    %68 = vector.broadcast %cst_29 : f32 to vector<4x1xf32>
    %69 = arith.addf %65, %68 : vector<4x1xf32>
    %70 = math.rsqrt %69 : vector<4x1xf32>
    %71 = vector.broadcast %70 : vector<4x1xf32> to vector<4x32xf32>
    %72 = arith.mulf %67, %71 : vector<4x32xf32>
    %73 = vector.extract_strided_slice %0 {offsets = [4, 0], sizes = [1, 32], strides = [1, 1]} : vector<8x128xf32> to vector<1x32xf32>
    %74 = vector.broadcast %73 : vector<1x32xf32> to vector<4x32xf32>
    %75 = arith.mulf %72, %74 : vector<4x32xf32>
    %76 = vector.extract_strided_slice %0 {offsets = [5, 0], sizes = [1, 32], strides = [1, 1]} : vector<8x128xf32> to vector<1x32xf32>
    %77 = vector.broadcast %76 : vector<1x32xf32> to vector<4x32xf32>
    %78 = arith.addf %75, %77 : vector<4x32xf32>
    %79 = vector.shape_cast %78 : vector<4x32xf32> to vector<1x4x32xf32>
    %c0_30 = arith.constant 0 : index
    %c0_31 = arith.constant 0 : index
    %c0_32 = arith.constant 0 : index
    %80 = vector.load %arg8[%c0_30, %c0_31, %c0_32] : memref<1x4x32xf32, #tpu.memory_space<vmem>>, vector<1x4x32xf32>
    tpu.vector_store %arg8[%c0_30, %c0_31, %c0_32], %79 {strides = array<i32>} : memref<1x4x32xf32, #tpu.memory_space<vmem>>, vector<1x4x32xf32>,
    return
  }
  func.func @transform_0(%arg0: i32) -> (i32, i32, i32) {
    %c0_i32 = arith.constant 0 : i32
    %c0_i32_0 = arith.constant 0 : i32
    %c0_i32_1 = arith.constant 0 : i32
    return %arg0, %c0_i32, %c0_i32_0 : i32, i32, i32
  }
  func.func @transform_1(%arg0: i32) -> (i32, i32) {
    %c0_i32 = arith.constant 0 : i32
    %c0_i32_0 = arith.constant 0 : i32
    %c0_i32_1 = arith.constant 0 : i32
    return %c0_i32, %c0_i32_0 : i32, i32
  }
  func.func @transform_2(%arg0: i32) -> (i32, i32) {
    %c0_i32 = arith.constant 0 : i32
    %c0_i32_0 = arith.constant 0 : i32
    %c0_i32_1 = arith.constant 0 : i32
    return %c0_i32, %c0_i32_0 : i32, i32
  }
  func.func @transform_3(%arg0: i32) -> (i32, i32) {
    %c0_i32 = arith.constant 0 : i32
    %c0_i32_0 = arith.constant 0 : i32
    %c0_i32_1 = arith.constant 0 : i32
    return %c0_i32, %c0_i32_0 : i32, i32
  }
  func.func @transform_4(%arg0: i32) -> (i32, i32) {
    %c0_i32 = arith.constant 0 : i32
    %c0_i32_0 = arith.constant 0 : i32
    %c0_i32_1 = arith.constant 0 : i32
    return %c0_i32, %c0_i32_0 : i32, i32
  }
  func.func @transform_5(%arg0: i32) -> (i32, i32) {
    %c0_i32 = arith.constant 0 : i32
    %c0_i32_0 = arith.constant 0 : i32
    %c0_i32_1 = arith.constant 0 : i32
    return %c0_i32, %c0_i32_0 : i32, i32
  }
  func.func @transform_6(%arg0: i32) -> (i32, i32) {
    %c0_i32 = arith.constant 0 : i32
    %c0_i32_0 = arith.constant 0 : i32
    %c0_i32_1 = arith.constant 0 : i32
    return %c0_i32, %c0_i32_0 : i32, i32
  }
  func.func @transform_7(%arg0: i32) -> (i32, i32, i32) {
    %c0_i32 = arith.constant 0 : i32
    %c0_i32_0 = arith.constant 0 : i32
    %c0_i32_1 = arith.constant 0 : i32
    return %arg0, %c0_i32, %c0_i32_0 : i32, i32, i32
  }
}

</mosaic_0001>

<llo_original>
// kernel: tpu_custom_call.1
$region0: #{tpu_custom_call.1}
  #allocation0 [shape = 'u32[]', space=smem, size = 0x4, offset = 0x4, fixed_abs, tag = 'smem constant byte address 0x4 - core index']
  #allocation1 [shape = 'u32[144,128]{1,0:T(1,128)}', space=vmem, size = 0x12000, scoped, tag = 'internal scratch']
  %s0 = inlined_call_operand.hbm [shape: f32[4,8,32], index: 0, kind: input, shape index: {}]
  %s1 = inlined_call_operand.hbm [shape: f32[32,96], index: 1, kind: input, shape index: {}]
  %s2 = inlined_call_operand.hbm [shape: f32[32,32], index: 2, kind: input, shape index: {}]
  %s3 = inlined_call_operand.hbm [shape: f32[32,32], index: 3, kind: input, shape index: {}]
  %s4 = inlined_call_operand.hbm [shape: f32[32,32], index: 4, kind: input, shape index: {}]
  %s5 = inlined_call_operand.hbm [shape: f32[32,32], index: 5, kind: input, shape index: {}]
  %s6 = inlined_call_operand.vmem [shape: f32[8,128], index: 6, kind: input, shape index: {}]
  %s7 = inlined_call_operand.hbm [shape: f32[1,4,32], index: 7, kind: output, shape index: {}]
  %s8 = sld [smem:[#allocation0]]
  $region62: #{tpu_custom_call.1} parent=0
    _
  %s10 = ssub.s32 1, %s8
  %s11 = scalar_select 0, %s10, %s8
  $region1: #{tpu_custom_call.1} parent=0
    #allocation2 [shape = 'u8[16384]{0}', space=vmem, size = 0x4000, scoped, tag = 'input window, operand 0, single buffered']
    #allocation3 [shape = 's32[1]{0}', space=sflag, size = 0x4, scoped, tag = 'scoped memory for tpu_custom_call.1']
    #allocation4 [shape = 's32[1]{0}', space=sflag, size = 0x4, scoped, tag = 'scoped memory for tpu_custom_call.1']
    #allocation5 [shape = 'u8[16384]{0}', space=vmem, size = 0x4000, scoped, tag = 'input window, operand 1, single buffered']
    #allocation6 [shape = 's32[1]{0}', space=sflag, size = 0x4, scoped, tag = 'scoped memory for tpu_custom_call.1']
    #allocation7 [shape = 'u8[16384]{0}', space=vmem, size = 0x4000, scoped, tag = 'input window, operand 2, single buffered']
    #allocation8 [shape = 'u8[16384]{0}', space=vmem, size = 0x4000, scoped, tag = 'input window, operand 3, single buffered']
    #allocation9 [shape = 's32[1]{0}', space=sflag, size = 0x4, scoped, tag = 'scoped memory for tpu_custom_call.1']
    #allocation10 [shape = 'u8[16384]{0}', space=vmem, size = 0x4000, scoped, tag = 'input window, operand 4, single buffered']
    #allocation11 [shape = 'u8[16384]{0}', space=vmem, size = 0x4000, scoped, tag = 'input window, operand 5, single buffered']
    #allocation12 [shape = 's32[1]{0}', space=sflag, size = 0x4, scoped, tag = 'scoped memory for tpu_custom_call.1']
    #allocation13 [shape = 'u8[2048]{0}', space=vmem, size = 0x800, scoped, tag = 'output window, operand 0, single buffered']
    %12 = vsyncpa [#allocation3], 0
    %13 = vsyncpa [#allocation6], 0
    %14 = vsyncpa [#allocation9], 0
    %15 = vsyncpa [#allocation12], 0
    %16 = vsyncpa [#allocation4], 0
    // Predicated region
    $region2: #{tpu_custom_call.1} parent=1 // pred_check
      _
    $region3: #{tpu_custom_call.1} parent=1 // pred_check_branch
      %18 = sbr.rel (0) target = $region5
    $region4: #{tpu_custom_call.1} parent=1 // pred_region
      %s20 = ssub.s32 512, 512
      %21 = vsyncadd [#allocation3], %s20
      %s22 = sshll.u32 [#allocation2], 4
      %s23 = int_to_ptr.vmem [resolvable:$true] %s22
      %28 = dma.hbm_to_vmem [thread:$0]  %s0, 512, %s23, [#allocation3], 128, 128, 8
    $region5: #{tpu_custom_call.1} parent=1 // pred_fallthru
      _
    // Predicated region
    $region6: #{tpu_custom_call.1} parent=1 // pred_check
      _
    $region7: #{tpu_custom_call.1} parent=1 // pred_check_branch
      %30 = sbr.rel (0) target = $region9
    $region8: #{tpu_custom_call.1} parent=1 // pred_region
      %s32 = ssub.s32 512, 512
      %33 = vsyncadd [#allocation6], %s32
      %s34 = sshll.u32 [#allocation5], 4
      %s35 = int_to_ptr.vmem [resolvable:$true] %s34
      %40 = dma.hbm_to_vmem [thread:$0]  %s1, 512, %s35, [#allocation6], 128, 128, 8
    $region9: #{tpu_custom_call.1} parent=1 // pred_fallthru
      _
    // Predicated region
    $region10: #{tpu_custom_call.1} parent=1 // pred_check
      _
    $region11: #{tpu_custom_call.1} parent=1 // pred_check_branch
      %42 = sbr.rel (0) target = $region13
    $region12: #{tpu_custom_call.1} parent=1 // pred_region
      %s44 = ssub.s32 512, 512
      %45 = vsyncadd [#allocation6], %s44
      %s46 = sshll.u32 [#allocation7], 4
      %s47 = int_to_ptr.vmem [resolvable:$true] %s46
      %52 = dma.hbm_to_vmem [thread:$0]  %s2, 512, %s47, [#allocation6], 128, 128, 8
    $region13: #{tpu_custom_call.1} parent=1 // pred_fallthru
      _
    // Predicated region
    $region14: #{tpu_custom_call.1} parent=1 // pred_check
      _
    $region15: #{tpu_custom_call.1} parent=1 // pred_check_branch
      %54 = sbr.rel (0) target = $region17
    $region16: #{tpu_custom_call.1} parent=1 // pred_region
      %s56 = ssub.s32 512, 512
      %57 = vsyncadd [#allocation9], %s56
      %s58 = sshll.u32 [#allocation8], 4
      %s59 = int_to_ptr.vmem [resolvable:$true] %s58
      %64 = dma.hbm_to_vmem [thread:$0]  %s3, 512, %s59, [#allocation9], 128, 128, 8
    $region17: #{tpu_custom_call.1} parent=1 // pred_fallthru
      _
    // Predicated region
    $region18: #{tpu_custom_call.1} parent=1 // pred_check
      _
    $region19: #{tpu_custom_call.1} parent=1 // pred_check_branch
      %66 = sbr.rel (0) target = $region21
    $region20: #{tpu_custom_call.1} parent=1 // pred_region
      %s68 = ssub.s32 512, 512
      %69 = vsyncadd [#allocation9], %s68
      %s70 = sshll.u32 [#allocation10], 4
      %s71 = int_to_ptr.vmem [resolvable:$true] %s70
      %76 = dma.hbm_to_vmem [thread:$0]  %s4, 512, %s71, [#allocation9], 128, 128, 8
    $region21: #{tpu_custom_call.1} parent=1 // pred_fallthru
      _
    // Predicated region
    $region22: #{tpu_custom_call.1} parent=1 // pred_check
      _
    $region23: #{tpu_custom_call.1} parent=1 // pred_check_branch
      %78 = sbr.rel (0) target = $region25
    $region24: #{tpu_custom_call.1} parent=1 // pred_region
      %s80 = ssub.s32 512, 512
      %81 = vsyncadd [#allocation12], %s80
      %s82 = sshll.u32 [#allocation11], 4
      %s83 = int_to_ptr.vmem [resolvable:$true] %s82
      %88 = dma.hbm_to_vmem [thread:$0]  %s5, 512, %s83, [#allocation12], 128, 128, 8
    $region25: #{tpu_custom_call.1} parent=1 // pred_fallthru
      _
    // Predicated region
    $region26: #{tpu_custom_call.1} parent=1 // pred_check
      _
    $region27: #{tpu_custom_call.1} parent=1 // pred_check_branch
      %90 = sbr.rel (0) target = $region29
    $region28: #{tpu_custom_call.1} parent=1 // pred_region
      _
    $region29: #{tpu_custom_call.1} parent=1 // pred_fallthru
      _
    // Predicated region
    $region30: #{tpu_custom_call.1} parent=1 // pred_check
      _
    $region31: #{tpu_custom_call.1} parent=1 // pred_check_branch
      %92 = sbr.rel (0) target = $region33
    $region32: #{tpu_custom_call.1} parent=1 // pred_region
      %93 = dma.done [#allocation3], 512
    $region33: #{tpu_custom_call.1} parent=1 // pred_fallthru
      _
    // Predicated region
    $region34: #{tpu_custom_call.1} parent=1 // pred_check
      _
    $region35: #{tpu_custom_call.1} parent=1 // pred_check_branch
      %95 = sbr.rel (0) target = $region37
    $region36: #{tpu_custom_call.1} parent=1 // pred_region
      %96 = dma.done [#allocation6], 512
    $region37: #{tpu_custom_call.1} parent=1 // pred_fallthru
      _
    // Predicated region
    $region38: #{tpu_custom_call.1} parent=1 // pred_check
      _
    $region39: #{tpu_custom_call.1} parent=1 // pred_check_branch
      %98 = sbr.rel (0) target = $region41
    $region40: #{tpu_custom_call.1} parent=1 // pred_region
      %99 = dma.done [#allocation6], 512
    $region41: #{tpu_custom_call.1} parent=1 // pred_fallthru
      _
    // Predicated region
    $region42: #{tpu_custom_call.1} parent=1 // pred_check
      _
    $region43: #{tpu_custom_call.1} parent=1 // pred_check_branch
      %101 = sbr.rel (0) target = $region45
    $region44: #{tpu_custom_call.1} parent=1 // pred_region
      %102 = dma.done [#allocation9], 512
    $region45: #{tpu_custom_call.1} parent=1 // pred_fallthru
      _
    // Predicated region
    $region46: #{tpu_custom_call.1} parent=1 // pred_check
      _
    $region47: #{tpu_custom_call.1} parent=1 // pred_check_branch
      %104 = sbr.rel (0) target = $region49
    $region48: #{tpu_custom_call.1} parent=1 // pred_region
      %105 = dma.done [#allocation9], 512
    $region49: #{tpu_custom_call.1} parent=1 // pred_fallthru
      _
    // Predicated region
    $region50: #{tpu_custom_call.1} parent=1 // pred_check
      _
    $region51: #{tpu_custom_call.1} parent=1 // pred_check_branch
      %107 = sbr.rel (0) target = $region53
    $region52: #{tpu_custom_call.1} parent=1 // pred_region
      %108 = dma.done [#allocation12], 512
    $region53: #{tpu_custom_call.1} parent=1 // pred_fallthru
      _
    %v109 = vld [vmem:[%s6] sm:$0xff]
    %v110 = vld [vmem:[#allocation11] sm:$0xff]
    %v111 = vld [vmem:[#allocation11 + $0x8] sm:$0xff]
    %v112 = vld [vmem:[#allocation11 + $0x10] sm:$0xff]
    %v113 = vld [vmem:[#allocation11 + $0x18] sm:$0xff]
    %v114 = vld [vmem:[#allocation2] sm:$0xff]
    %v115 = vld [vmem:[#allocation2 + $0x8] sm:$0xff]
    %v116 = vld [vmem:[#allocation2 + $0x10] sm:$0xff]
    %v117 = vld [vmem:[#allocation2 + $0x18] sm:$0xff]
    %v118 = vld [vmem:[#allocation5] sm:$0xff]
    %v119 = vld [vmem:[#allocation5 + $0x8] sm:$0xff]
    %v120 = vld [vmem:[#allocation5 + $0x10] sm:$0xff]
    %v121 = vld [vmem:[#allocation5 + $0x18] sm:$0xff]
    %v122 = vlaneseq
    %v123 = vshrl.u32 %v122, 7
    %v124 = vsub.s32 0, %v123
    %v125 = vrot.slane %v109, %v124
    %vm126 = vcmask 261120
    %v128 = vsel %vm126, %v114, 0
    %v131 = vsel %vm126, %v115, 0
    %v134 = vsel %vm126, %v116, 0
    %v137 = vsel %vm126, %v117, 0
    %139 = vmatprep.subr.mxu0 0.0
    %140 = vmatpush1.msra.mxu0 %v118
    %141 = vmatprep.subr.mxu0 0.0
    %142 = vmatpush1.msra.mxu0 %v119
    %143 = vmatprep.subr.mxu0 0.0
    %144 = vmatpush1.msra.mxu0 %v120
    %145 = vmatprep.subr.mxu0 0.0
    %146 = vmatpush1.msra.mxu0 %v121
    %147 = vmatprep.subr.mxu0 0.0
    %148 = vmatpush1.msra.mxu0 0.0
    %149 = vmatprep.subr.mxu0 0.0
    %150 = vmatpush1.msra.mxu0 0.0
    %151 = vmatprep.subr.mxu0 0.0
    %152 = vmatpush1.msra.mxu0 0.0
    %153 = vmatprep.subr.mxu0 0.0
    %154 = vmatpush1.msra.mxu0 0.0
    %155 = vmatprep.subr.mxu0 0.0
    %156 = vmatpush1.msra.mxu0 0.0
    %157 = vmatprep.subr.mxu0 0.0
    %158 = vmatpush1.msra.mxu0 0.0
    %159 = vmatprep.subr.mxu0 0.0
    %160 = vmatpush1.msra.mxu0 0.0
    %161 = vmatprep.subr.mxu0 0.0
    %162 = vmatpush1.msra.mxu0 0.0
    %163 = vmatprep.subr.mxu0 0.0
    %164 = vmatpush1.msra.mxu0 0.0
    %165 = vmatprep.subr.mxu0 0.0
    %166 = vmatpush1.msra.mxu0 0.0
    %167 = vmatprep.subr.mxu0 0.0
    %168 = vmatpush1.msra.mxu0 0.0
    %169 = vmatprep.subr.mxu0 0.0
    %170 = vmatpush1.msra.mxu0 0.0
    %171 = vmatprep.subr.mxu0 0.0
    %172 = vmatpush1.msra.mxu0 0.0
    %173 = vmatprep.subr.mxu0 0.0
    %174 = vmatpush1.msra.mxu0 0.0
    %175 = vmatprep.subr.mxu0 0.0
    %176 = vmatpush1.msra.mxu0 0.0
    %177 = vmatprep.subr.mxu0 0.0
    %178 = vmatpush1.msra.mxu0 0.0
    %179 = vmatprep.subr.mxu0 0.0
    %180 = vmatpush1.msra.mxu0 0.0
    %181 = vmatprep.subr.mxu0 0.0
    %182 = vmatpush1.msra.mxu0 0.0
    %183 = vmatprep.subr.mxu0 0.0
    %184 = vmatpush1.msra.mxu0 0.0
    %185 = vmatprep.subr.mxu0 0.0
    %186 = vmatpush1.msra.mxu0 0.0
    %187 = vmatprep.subr.mxu0 0.0
    %188 = vmatpush1.msra.mxu0 0.0
    %189 = vmatprep.subr.mxu0 0.0
    %190 = vmatpush1.msra.mxu0 0.0
    %191 = vmatprep.subr.mxu0 0.0
    %192 = vmatpush1.msra.mxu0 0.0
    %193 = vmatprep.subr.mxu0 0.0
    %194 = vmatpush1.msra.mxu0 0.0
    %195 = vmatprep.subr.mxu0 0.0
    %196 = vmatpush1.msra.mxu0 0.0
    %197 = vmatprep.subr.mxu0 0.0
    %198 = vmatpush1.msra.mxu0 0.0
    %199 = vmatprep.subr.mxu0 0.0
    %200 = vmatpush1.msra.mxu0 0.0
    %201 = vmatprep.subr.mxu0 0.0
    %202 = vmatpush1.msra.mxu0 0.0
    %203 = vmatprep.mubr.f32.mxu0 0.0
    %204 = vmatmul.mubr.f32.gmra.mrb[0].mxu0 %v128
    %v205 = vpop.f32.mrb[0].mxu0
    %v206 = vadd.f32 %v125, %v205
    %v207 = vpop.f32.mrb[0].mxu0
    %208 = vmatprep.mubr.f32.mxu0 0.0
    %209 = vmatmul.mubr.f32.gmra.mrb[0].mxu0 %v131
    %v210 = vpop.f32.mrb[0].mxu0
    %v211 = vadd.f32 %v125, %v210
    %v212 = vpop.f32.mrb[0].mxu0
    %213 = vmatprep.mubr.f32.mxu0 0.0
    %214 = vmatmul.mubr.f32.gmra.mrb[0].mxu0 %v134
    %v215 = vpop.f32.mrb[0].mxu0
    %v216 = vadd.f32 %v125, %v215
    %v217 = vpop.f32.mrb[0].mxu0
    %218 = vmatprep.mubr.f32.mxu0 0.0
    %219 = vmatmul.mubr.f32.gmra.mrb[0].mxu0 %v137
    %v220 = vpop.f32.mrb[0].mxu0
    %v221 = vadd.f32 %v125, %v220
    %v222 = vpop.f32.mrb[0].mxu0
    %223 = vdwg.mxu0
    %v224 = vmul.f32 %v206, %v110
    %v225 = vmul.f32 %v206, %v111
    %v226 = vmul.f32 %v206, %v112
    %v227 = vmul.f32 %v206, %v113
    %v228 = vmul.f32 %v211, %v110
    %v229 = vmul.f32 %v211, %v111
    %v230 = vmul.f32 %v211, %v112
    %v231 = vmul.f32 %v211, %v113
    %v232 = vmul.f32 %v216, %v110
    %v233 = vmul.f32 %v216, %v111
    %v234 = vmul.f32 %v216, %v112
    %v235 = vmul.f32 %v216, %v113
    %v236 = vmul.f32 %v221, %v110
    %v237 = vmul.f32 %v221, %v111
    %v238 = vmul.f32 %v221, %v112
    %v239 = vmul.f32 %v221, %v113
    %241 = vrot.lane.b32.xlu0 %v206, 96
    %v242 = vpop.permute.xlu0 %241
    %v244 = vsel %vm126, %v224, 0
    %v247 = vsel %vm126, %v225, 0
    %v250 = vsel %vm126, %v226, 0
    %v253 = vsel %vm126, %v227, 0
    %v255 = vsel %vm126, %v242, 0
    %257 = vmatprep.subr.mxu0 0.0
    %258 = vmatpush1.xpose.msra.mxu0 %v255
    %259 = vmatprep.subr.mxu0 0.0
    %260 = vmatpush1.xpose.msra.mxu0 0.0
    %261 = vmatprep.subr.mxu0 0.0
    %262 = vmatpush1.xpose.msra.mxu0 0.0
    %263 = vmatprep.subr.mxu0 0.0
    %264 = vmatpush1.xpose.msra.mxu0 0.0
    %265 = vmatprep.subr.mxu0 0.0
    %266 = vmatpush1.xpose.msra.mxu0 0.0
    %267 = vmatprep.subr.mxu0 0.0
    %268 = vmatpush1.xpose.msra.mxu0 0.0
    %269 = vmatprep.subr.mxu0 0.0
    %270 = vmatpush1.xpose.msra.mxu0 0.0
    %271 = vmatprep.subr.mxu0 0.0
    %272 = vmatpush1.xpose.msra.mxu0 0.0
    %273 = vmatprep.subr.mxu0 0.0
    %274 = vmatpush1.xpose.msra.mxu0 0.0
    %275 = vmatprep.subr.mxu0 0.0
    %276 = vmatpush1.xpose.msra.mxu0 0.0
    %277 = vmatprep.subr.mxu0 0.0
    %278 = vmatpush1.xpose.msra.mxu0 0.0
    %279 = vmatprep.subr.mxu0 0.0
    %280 = vmatpush1.xpose.msra.mxu0 0.0
    %281 = vmatprep.subr.mxu0 0.0
    %282 = vmatpush1.xpose.msra.mxu0 0.0
    %283 = vmatprep.subr.mxu0 0.0
    %284 = vmatpush1.xpose.msra.mxu0 0.0
    %285 = vmatprep.subr.mxu0 0.0
    %286 = vmatpush1.xpose.msra.mxu0 0.0
    %287 = vmatprep.subr.mxu0 0.0
    %288 = vmatpush1.xpose.msra.mxu0 0.0
    %289 = vmatprep.subr.mxu0 0.0
    %290 = vmatpush1.xpose.msra.mxu0 0.0
    %291 = vmatprep.subr.mxu0 0.0
    %292 = vmatpush1.xpose.msra.mxu0 0.0
    %293 = vmatprep.subr.mxu0 0.0
    %294 = vmatpush1.xpose.msra.mxu0 0.0
    %295 = vmatprep.subr.mxu0 0.0
    %296 = vmatpush1.xpose.msra.mxu0 0.0
    %297 = vmatprep.subr.mxu0 0.0
    %298 = vmatpush1.xpose.msra.mxu0 0.0
    %299 = vmatprep.subr.mxu0 0.0
    %300 = vmatpush1.xpose.msra.mxu0 0.0
    %301 = vmatprep.subr.mxu0 0.0
    %302 = vmatpush1.xpose.msra.mxu0 0.0
    %303 = vmatprep.subr.mxu0 0.0
    %304 = vmatpush1.xpose.msra.mxu0 0.0
    %305 = vmatprep.subr.mxu0 0.0
    %306 = vmatpush1.xpose.msra.mxu0 0.0
    %307 = vmatprep.subr.mxu0 0.0
    %308 = vmatpush1.xpose.msra.mxu0 0.0
    %309 = vmatprep.subr.mxu0 0.0
    %310 = vmatpush1.xpose.msra.mxu0 0.0
    %311 = vmatprep.subr.mxu0 0.0
    %312 = vmatpush1.xpose.msra.mxu0 0.0
    %313 = vmatprep.subr.mxu0 0.0
    %314 = vmatpush1.xpose.msra.mxu0 0.0
    %315 = vmatprep.subr.mxu0 0.0
    %316 = vmatpush1.xpose.msra.mxu0 0.0
    %317 = vmatprep.subr.mxu0 0.0
    %318 = vmatpush1.xpose.msra.mxu0 0.0
    %319 = vmatprep.subr.mxu0 0.0
    %320 = vmatpush1.xpose.msra.mxu0 0.0
    %321 = vmatprep.mubr.f32.mxu0 0.0
    %322 = vmatmul.mubr.f32.gmra.mrb[0].mxu0 %v244
    %v323 = vpop.f32.mrb[0].mxu0
    %v324 = vadd.f32 0.0, %v323
    %v325 = vpop.f32.mrb[0].mxu0
    %326 = vmatprep.mubr.f32.mxu0 0.0
    %327 = vmatmul.mubr.f32.gmra.mrb[0].mxu0 %v247
    %v328 = vpop.f32.mrb[0].mxu0
    %v329 = vadd.f32 0.0, %v328
    %v330 = vpop.f32.mrb[0].mxu0
    %331 = vmatprep.mubr.f32.mxu0 0.0
    %332 = vmatmul.mubr.f32.gmra.mrb[0].mxu0 %v250
    %v333 = vpop.f32.mrb[0].mxu0
    %v334 = vadd.f32 0.0, %v333
    %v335 = vpop.f32.mrb[0].mxu0
    %336 = vmatprep.mubr.f32.mxu0 0.0
    %337 = vmatmul.mubr.f32.gmra.mrb[0].mxu0 %v253
    %v338 = vpop.f32.mrb[0].mxu0
    %v339 = vadd.f32 0.0, %v338
    %v340 = vpop.f32.mrb[0].mxu0
    %341 = vdwg.mxu0
    %343 = vrot.lane.b32.xlu0 %v211, 96
    %v344 = vpop.permute.xlu0 %343
    %v346 = vsel %vm126, %v228, 0
    %v349 = vsel %vm126, %v229, 0
    %v352 = vsel %vm126, %v230, 0
    %v355 = vsel %vm126, %v231, 0
    %v357 = vsel %vm126, %v344, 0
    %359 = vmatprep.subr.mxu0 0.0
    %360 = vmatpush1.xpose.msra.mxu0 %v357
    %361 = vmatprep.subr.mxu0 0.0
    %362 = vmatpush1.xpose.msra.mxu0 0.0
    %363 = vmatprep.subr.mxu0 0.0
    %364 = vmatpush1.xpose.msra.mxu0 0.0
    %365 = vmatprep.subr.mxu0 0.0
    %366 = vmatpush1.xpose.msra.mxu0 0.0
    %367 = vmatprep.subr.mxu0 0.0
    %368 = vmatpush1.xpose.msra.mxu0 0.0
    %369 = vmatprep.subr.mxu0 0.0
    %370 = vmatpush1.xpose.msra.mxu0 0.0
    %371 = vmatprep.subr.mxu0 0.0
    %372 = vmatpush1.xpose.msra.mxu0 0.0
    %373 = vmatprep.subr.mxu0 0.0
    %374 = vmatpush1.xpose.msra.mxu0 0.0
    %375 = vmatprep.subr.mxu0 0.0
    %376 = vmatpush1.xpose.msra.mxu0 0.0
    %377 = vmatprep.subr.mxu0 0.0
    %378 = vmatpush1.xpose.msra.mxu0 0.0
    %379 = vmatprep.subr.mxu0 0.0
    %380 = vmatpush1.xpose.msra.mxu0 0.0
    %381 = vmatprep.subr.mxu0 0.0
    %382 = vmatpush1.xpose.msra.mxu0 0.0
    %383 = vmatprep.subr.mxu0 0.0
    %384 = vmatpush1.xpose.msra.mxu0 0.0
    %385 = vmatprep.subr.mxu0 0.0
    %386 = vmatpush1.xpose.msra.mxu0 0.0
    %387 = vmatprep.subr.mxu0 0.0
    %388 = vmatpush1.xpose.msra.mxu0 0.0
    %389 = vmatprep.subr.mxu0 0.0
    %390 = vmatpush1.xpose.msra.mxu0 0.0
    %391 = vmatprep.subr.mxu0 0.0
    %392 = vmatpush1.xpose.msra.mxu0 0.0
    %393 = vmatprep.subr.mxu0 0.0
    %394 = vmatpush1.xpose.msra.mxu0 0.0
    %395 = vmatprep.subr.mxu0 0.0
    %396 = vmatpush1.xpose.msra.mxu0 0.0
    %397 = vmatprep.subr.mxu0 0.0
    %398 = vmatpush1.xpose.msra.mxu0 0.0
    %399 = vmatprep.subr.mxu0 0.0
    %400 = vmatpush1.xpose.msra.mxu0 0.0
    %401 = vmatprep.subr.mxu0 0.0
    %402 = vmatpush1.xpose.msra.mxu0 0.0
    %403 = vmatprep.subr.mxu0 0.0
    %404 = vmatpush1.xpose.msra.mxu0 0.0
    %405 = vmatprep.subr.mxu0 0.0
    %406 = vmatpush1.xpose.msra.mxu0 0.0
    %407 = vmatprep.subr.mxu0 0.0
    %408 = vmatpush1.xpose.msra.mxu0 0.0
    %409 = vmatprep.subr.mxu0 0.0
    %410 = vmatpush1.xpose.msra.mxu0 0.0
    %411 = vmatprep.subr.mxu0 0.0
    %412 = vmatpush1.xpose.msra.mxu0 0.0
    %413 = vmatprep.subr.mxu0 0.0
    %414 = vmatpush1.xpose.msra.mxu0 0.0
    %415 = vmatprep.subr.mxu0 0.0
    %416 = vmatpush1.xpose.msra.mxu0 0.0
    %417 = vmatprep.subr.mxu0 0.0
    %418 = vmatpush1.xpose.msra.mxu0 0.0
    %419 = vmatprep.subr.mxu0 0.0
    %420 = vmatpush1.xpose.msra.mxu0 0.0
    %421 = vmatprep.subr.mxu0 0.0
    %422 = vmatpush1.xpose.msra.mxu0 0.0
    %423 = vmatprep.mubr.f32.mxu0 0.0
    %424 = vmatmul.mubr.f32.gmra.mrb[0].mxu0 %v346
    %v425 = vpop.f32.mrb[0].mxu0
    %v426 = vadd.f32 0.0, %v425
    %v427 = vpop.f32.mrb[0].mxu0
    %428 = vmatprep.mubr.f32.mxu0 0.0
    %429 = vmatmul.mubr.f32.gmra.mrb[0].mxu0 %v349
    %v430 = vpop.f32.mrb[0].mxu0
    %v431 = vadd.f32 0.0, %v430
    %v432 = vpop.f32.mrb[0].mxu0
    %433 = vmatprep.mubr.f32.mxu0 0.0
    %434 = vmatmul.mubr.f32.gmra.mrb[0].mxu0 %v352
    %v435 = vpop.f32.mrb[0].mxu0
    %v436 = vadd.f32 0.0, %v435
    %v437 = vpop.f32.mrb[0].mxu0
    %438 = vmatprep.mubr.f32.mxu0 0.0
    %439 = vmatmul.mubr.f32.gmra.mrb[0].mxu0 %v355
    %v440 = vpop.f32.mrb[0].mxu0
    %v441 = vadd.f32 0.0, %v440
    %v442 = vpop.f32.mrb[0].mxu0
    %443 = vdwg.mxu0
    %445 = vrot.lane.b32.xlu0 %v216, 96
    %v446 = vpop.permute.xlu0 %445
    %v448 = vsel %vm126, %v232, 0
    %v451 = vsel %vm126, %v233, 0
    %v454 = vsel %vm126, %v234, 0
    %v457 = vsel %vm126, %v235, 0
    %v459 = vsel %vm126, %v446, 0
    %461 = vmatprep.subr.mxu0 0.0
    %462 = vmatpush1.xpose.msra.mxu0 %v459
    %463 = vmatprep.subr.mxu0 0.0
    %464 = vmatpush1.xpose.msra.mxu0 0.0
    %465 = vmatprep.subr.mxu0 0.0
    %466 = vmatpush1.xpose.msra.mxu0 0.0
    %467 = vmatprep.subr.mxu0 0.0
    %468 = vmatpush1.xpose.msra.mxu0 0.0
    %469 = vmatprep.subr.mxu0 0.0
    %470 = vmatpush1.xpose.msra.mxu0 0.0
    %471 = vmatprep.subr.mxu0 0.0
    %472 = vmatpush1.xpose.msra.mxu0 0.0
    %473 = vmatprep.subr.mxu0 0.0
    %474 = vmatpush1.xpose.msra.mxu0 0.0
    %475 = vmatprep.subr.mxu0 0.0
    %476 = vmatpush1.xpose.msra.mxu0 0.0
    %477 = vmatprep.subr.mxu0 0.0
    %478 = vmatpush1.xpose.msra.mxu0 0.0
    %479 = vmatprep.subr.mxu0 0.0
    %480 = vmatpush1.xpose.msra.mxu0 0.0
    %481 = vmatprep.subr.mxu0 0.0
    %482 = vmatpush1.xpose.msra.mxu0 0.0
    %483 = vmatprep.subr.mxu0 0.0
    %484 = vmatpush1.xpose.msra.mxu0 0.0
    %485 = vmatprep.subr.mxu0 0.0
    %486 = vmatpush1.xpose.msra.mxu0 0.0
    %487 = vmatprep.subr.mxu0 0.0
    %488 = vmatpush1.xpose.msra.mxu0 0.0
    %489 = vmatprep.subr.mxu0 0.0
    %490 = vmatpush1.xpose.msra.mxu0 0.0
    %491 = vmatprep.subr.mxu0 0.0
    %492 = vmatpush1.xpose.msra.mxu0 0.0
    %493 = vmatprep.subr.mxu0 0.0
    %494 = vmatpush1.xpose.msra.mxu0 0.0
    %495 = vmatprep.subr.mxu0 0.0
    %496 = vmatpush1.xpose.msra.mxu0 0.0
    %497 = vmatprep.subr.mxu0 0.0
    %498 = vmatpush1.xpose.msra.mxu0 0.0
    %499 = vmatprep.subr.mxu0 0.0
    %500 = vmatpush1.xpose.msra.mxu0 0.0
    %501 = vmatprep.subr.mxu0 0.0
    %502 = vmatpush1.xpose.msra.mxu0 0.0
    %503 = vmatprep.subr.mxu0 0.0
    %504 = vmatpush1.xpose.msra.mxu0 0.0
    %505 = vmatprep.subr.mxu0 0.0
    %506 = vmatpush1.xpose.msra.mxu0 0.0
    %507 = vmatprep.subr.mxu0 0.0
    %508 = vmatpush1.xpose.msra.mxu0 0.0
    %509 = vmatprep.subr.mxu0 0.0
    %510 = vmatpush1.xpose.msra.mxu0 0.0
    %511 = vmatprep.subr.mxu0 0.0
    %512 = vmatpush1.xpose.msra.mxu0 0.0
    %513 = vmatprep.subr.mxu0 0.0
    %514 = vmatpush1.xpose.msra.mxu0 0.0
    %515 = vmatprep.subr.mxu0 0.0
    %516 = vmatpush1.xpose.msra.mxu0 0.0
    %517 = vmatprep.subr.mxu0 0.0
    %518 = vmatpush1.xpose.msra.mxu0 0.0
    %519 = vmatprep.subr.mxu0 0.0
    %520 = vmatpush1.xpose.msra.mxu0 0.0
    %521 = vmatprep.subr.mxu0 0.0
    %522 = vmatpush1.xpose.msra.mxu0 0.0
    %523 = vmatprep.subr.mxu0 0.0
    %524 = vmatpush1.xpose.msra.mxu0 0.0
    %525 = vmatprep.mubr.f32.mxu0 0.0
    %526 = vmatmul.mubr.f32.gmra.mrb[0].mxu0 %v448
    %v527 = vpop.f32.mrb[0].mxu0
    %v528 = vadd.f32 0.0, %v527
    %v529 = vpop.f32.mrb[0].mxu0
    %530 = vmatprep.mubr.f32.mxu0 0.0
    %531 = vmatmul.mubr.f32.gmra.mrb[0].mxu0 %v451
    %v532 = vpop.f32.mrb[0].mxu0
    %v533 = vadd.f32 0.0, %v532
    %v534 = vpop.f32.mrb[0].mxu0
    %535 = vmatprep.mubr.f32.mxu0 0.0
    %536 = vmatmul.mubr.f32.gmra.mrb[0].mxu0 %v454
    %v537 = vpop.f32.mrb[0].mxu0
    %v538 = vadd.f32 0.0, %v537
    %v539 = vpop.f32.mrb[0].mxu0
    %540 = vmatprep.mubr.f32.mxu0 0.0
    %541 = vmatmul.mubr.f32.gmra.mrb[0].mxu0 %v457
    %v542 = vpop.f32.mrb[0].mxu0
    %v543 = vadd.f32 0.0, %v542
    %v544 = vpop.f32.mrb[0].mxu0
    %545 = vdwg.mxu0
    %547 = vrot.lane.b32.xlu0 %v221, 96
    %v548 = vpop.permute.xlu0 %547
    %v550 = vsel %vm126, %v236, 0
    %v553 = vsel %vm126, %v237, 0
    %v556 = vsel %vm126, %v238, 0
    %v559 = vsel %vm126, %v239, 0
    %v561 = vsel %vm126, %v548, 0
    %563 = vmatprep.subr.mxu0 0.0
    %564 = vmatpush1.xpose.msra.mxu0 %v561
    %565 = vmatprep.subr.mxu0 0.0
    %566 = vmatpush1.xpose.msra.mxu0 0.0
    %567 = vmatprep.subr.mxu0 0.0
    %568 = vmatpush1.xpose.msra.mxu0 0.0
    %569 = vmatprep.subr.mxu0 0.0
    %570 = vmatpush1.xpose.msra.mxu0 0.0
    %571 = vmatprep.subr.mxu0 0.0
    %572 = vmatpush1.xpose.msra.mxu0 0.0
    %573 = vmatprep.subr.mxu0 0.0
    %574 = vmatpush1.xpose.msra.mxu0 0.0
    %575 = vmatprep.subr.mxu0 0.0
    %576 = vmatpush1.xpose.msra.mxu0 0.0
    %577 = vmatprep.subr.mxu0 0.0
    %578 = vmatpush1.xpose.msra.mxu0 0.0
    %579 = vmatprep.subr.mxu0 0.0
    %580 = vmatpush1.xpose.msra.mxu0 0.0
    %581 = vmatprep.subr.mxu0 0.0
    %582 = vmatpush1.xpose.msra.mxu0 0.0
    %583 = vmatprep.subr.mxu0 0.0
    %584 = vmatpush1.xpose.msra.mxu0 0.0
    %585 = vmatprep.subr.mxu0 0.0
    %586 = vmatpush1.xpose.msra.mxu0 0.0
    %587 = vmatprep.subr.mxu0 0.0
    %588 = vmatpush1.xpose.msra.mxu0 0.0
    %589 = vmatprep.subr.mxu0 0.0
    %590 = vmatpush1.xpose.msra.mxu0 0.0
    %591 = vmatprep.subr.mxu0 0.0
    %592 = vmatpush1.xpose.msra.mxu0 0.0
    %593 = vmatprep.subr.mxu0 0.0
    %594 = vmatpush1.xpose.msra.mxu0 0.0
    %595 = vmatprep.subr.mxu0 0.0
    %596 = vmatpush1.xpose.msra.mxu0 0.0
    %597 = vmatprep.subr.mxu0 0.0
    %598 = vmatpush1.xpose.msra.mxu0 0.0
    %599 = vmatprep.subr.mxu0 0.0
    %600 = vmatpush1.xpose.msra.mxu0 0.0
    %601 = vmatprep.subr.mxu0 0.0
    %602 = vmatpush1.xpose.msra.mxu0 0.0
    %603 = vmatprep.subr.mxu0 0.0
    %604 = vmatpush1.xpose.msra.mxu0 0.0
    %605 = vmatprep.subr.mxu0 0.0
    %606 = vmatpush1.xpose.msra.mxu0 0.0
    %607 = vmatprep.subr.mxu0 0.0
    %608 = vmatpush1.xpose.msra.mxu0 0.0
    %609 = vmatprep.subr.mxu0 0.0
    %610 = vmatpush1.xpose.msra.mxu0 0.0
    %611 = vmatprep.subr.mxu0 0.0
    %612 = vmatpush1.xpose.msra.mxu0 0.0
    %613 = vmatprep.subr.mxu0 0.0
    %614 = vmatpush1.xpose.msra.mxu0 0.0
    %615 = vmatprep.subr.mxu0 0.0
    %616 = vmatpush1.xpose.msra.mxu0 0.0
    %617 = vmatprep.subr.mxu0 0.0
    %618 = vmatpush1.xpose.msra.mxu0 0.0
    %619 = vmatprep.subr.mxu0 0.0
    %620 = vmatpush1.xpose.msra.mxu0 0.0
    %621 = vmatprep.subr.mxu0 0.0
    %622 = vmatpush1.xpose.msra.mxu0 0.0
    %623 = vmatprep.subr.mxu0 0.0
    %624 = vmatpush1.xpose.msra.mxu0 0.0
    %625 = vmatprep.subr.mxu0 0.0
    %626 = vmatpush1.xpose.msra.mxu0 0.0
    %627 = vmatprep.mubr.f32.mxu0 0.0
    %628 = vmatmul.mubr.f32.gmra.mrb[0].mxu0 %v550
    %v629 = vpop.f32.mrb[0].mxu0
    %v630 = vadd.f32 0.0, %v629
    %v631 = vpop.f32.mrb[0].mxu0
    %632 = vmatprep.mubr.f32.mxu0 0.0
    %633 = vmatmul.mubr.f32.gmra.mrb[0].mxu0 %v553
    %v634 = vpop.f32.mrb[0].mxu0
    %v635 = vadd.f32 0.0, %v634
    %v636 = vpop.f32.mrb[0].mxu0
    %637 = vmatprep.mubr.f32.mxu0 0.0
    %638 = vmatmul.mubr.f32.gmra.mrb[0].mxu0 %v556
    %v639 = vpop.f32.mrb[0].mxu0
    %v640 = vadd.f32 0.0, %v639
    %v641 = vpop.f32.mrb[0].mxu0
    %642 = vmatprep.mubr.f32.mxu0 0.0
    %643 = vmatmul.mubr.f32.gmra.mrb[0].mxu0 %v559
    %v644 = vpop.f32.mrb[0].mxu0
    %v645 = vadd.f32 0.0, %v644
    %v646 = vpop.f32.mrb[0].mxu0
    %647 = vdwg.mxu0
    %vm648 = vcmask 64512
    %v649 = vsel %vm648, %v324, -inf
    %650 = vmax.xlane.f32.xlu0 %v649
    %v651 = vpop.xlane.xlu0 %650
    %v652 = vsel %vm648, %v329, -inf
    %653 = vmax.xlane.f32.xlu0 %v652
    %v654 = vpop.xlane.xlu0 %653
    %v655 = vsel %vm648, %v334, -inf
    %656 = vmax.xlane.f32.xlu0 %v655
    %v657 = vpop.xlane.xlu0 %656
    %v658 = vsel %vm648, %v339, -inf
    %659 = vmax.xlane.f32.xlu0 %v658
    %v660 = vpop.xlane.xlu0 %659
    %v661 = vsel %vm648, %v426, -inf
    %662 = vmax.xlane.f32.xlu0 %v661
    %v663 = vpop.xlane.xlu0 %662
    %v664 = vsel %vm648, %v431, -inf
    %665 = vmax.xlane.f32.xlu0 %v664
    %v666 = vpop.xlane.xlu0 %665
    %v667 = vsel %vm648, %v436, -inf
    %668 = vmax.xlane.f32.xlu0 %v667
    %v669 = vpop.xlane.xlu0 %668
    %v670 = vsel %vm648, %v441, -inf
    %671 = vmax.xlane.f32.xlu0 %v670
    %v672 = vpop.xlane.xlu0 %671
    %v673 = vsel %vm648, %v528, -inf
    %674 = vmax.xlane.f32.xlu0 %v673
    %v675 = vpop.xlane.xlu0 %674
    %v676 = vsel %vm648, %v533, -inf
    %677 = vmax.xlane.f32.xlu0 %v676
    %v678 = vpop.xlane.xlu0 %677
    %v679 = vsel %vm648, %v538, -inf
    %680 = vmax.xlane.f32.xlu0 %v679
    %v681 = vpop.xlane.xlu0 %680
    %v682 = vsel %vm648, %v543, -inf
    %683 = vmax.xlane.f32.xlu0 %v682
    %v684 = vpop.xlane.xlu0 %683
    %v685 = vsel %vm648, %v630, -inf
    %686 = vmax.xlane.f32.xlu0 %v685
    %v687 = vpop.xlane.xlu0 %686
    %v688 = vsel %vm648, %v635, -inf
    %689 = vmax.xlane.f32.xlu0 %v688
    %v690 = vpop.xlane.xlu0 %689
    %v691 = vsel %vm648, %v640, -inf
    %692 = vmax.xlane.f32.xlu0 %v691
    %v693 = vpop.xlane.xlu0 %692
    %v694 = vsel %vm648, %v645, -inf
    %695 = vmax.xlane.f32.xlu0 %v694
    %v696 = vpop.xlane.xlu0 %695
    %v697 = vsub.f32 %v324, %v651
    %v698 = vsub.f32 %v329, %v654
    %v699 = vsub.f32 %v334, %v657
    %v700 = vsub.f32 %v339, %v660
    %v701 = vsub.f32 %v426, %v663
    %v702 = vsub.f32 %v431, %v666
    %v703 = vsub.f32 %v436, %v669
    %v704 = vsub.f32 %v441, %v672
    %v705 = vsub.f32 %v528, %v675
    %v706 = vsub.f32 %v533, %v678
    %v707 = vsub.f32 %v538, %v681
    %v708 = vsub.f32 %v543, %v684
    %v709 = vsub.f32 %v630, %v687
    %v710 = vsub.f32 %v635, %v690
    %v711 = vsub.f32 %v640, %v693
    %v712 = vsub.f32 %v645, %v696
    %v713 = vmul.f32 %v697, 1.442695
    %v714 = vpow.pop %v713
    %v715 = vmul.f32 %v698, 1.442695
    %v716 = vpow.pop %v715
    %v717 = vmul.f32 %v699, 1.442695
    %v718 = vpow.pop %v717
    %v719 = vmul.f32 %v700, 1.442695
    %v720 = vpow.pop %v719
    %v721 = vmul.f32 %v701, 1.442695
    %v722 = vpow.pop %v721
    %v723 = vmul.f32 %v702, 1.442695
    %v724 = vpow.pop %v723
    %v725 = vmul.f32 %v703, 1.442695
    %v726 = vpow.pop %v725
    %v727 = vmul.f32 %v704, 1.442695
    %v728 = vpow.pop %v727
    %v729 = vmul.f32 %v705, 1.442695
    %v730 = vpow.pop %v729
    %v731 = vmul.f32 %v706, 1.442695
    %v732 = vpow.pop %v731
    %v733 = vmul.f32 %v707, 1.442695
    %v734 = vpow.pop %v733
    %v735 = vmul.f32 %v708, 1.442695
    %v736 = vpow.pop %v735
    %v737 = vmul.f32 %v709, 1.442695
    %v738 = vpow.pop %v737
    %v739 = vmul.f32 %v710, 1.442695
    %v740 = vpow.pop %v739
    %v741 = vmul.f32 %v711, 1.442695
    %v742 = vpow.pop %v741
    %v743 = vmul.f32 %v712, 1.442695
    %v744 = vpow.pop %v743
    %v745 = vsel %vm648, %v714, 0.0
    %746 = vadd.xlane.f32.xlu0 %v745
    %v747 = vpop.xlane.xlu0 %746
    %v748 = vsel %vm648, %v716, 0.0
    %749 = vadd.xlane.f32.xlu0 %v748
    %v750 = vpop.xlane.xlu0 %749
    %v751 = vsel %vm648, %v718, 0.0
    %752 = vadd.xlane.f32.xlu0 %v751
    %v753 = vpop.xlane.xlu0 %752
    %v754 = vsel %vm648, %v720, 0.0
    %755 = vadd.xlane.f32.xlu0 %v754
    %v756 = vpop.xlane.xlu0 %755
    %v757 = vsel %vm648, %v722, 0.0
    %758 = vadd.xlane.f32.xlu0 %v757
    %v759 = vpop.xlane.xlu0 %758
    %v760 = vsel %vm648, %v724, 0.0
    %761 = vadd.xlane.f32.xlu0 %v760
    %v762 = vpop.xlane.xlu0 %761
    %v763 = vsel %vm648, %v726, 0.0
    %764 = vadd.xlane.f32.xlu0 %v763
    %v765 = vpop.xlane.xlu0 %764
    %v766 = vsel %vm648, %v728, 0.0
    %767 = vadd.xlane.f32.xlu0 %v766
    %v768 = vpop.xlane.xlu0 %767
    %v769 = vsel %vm648, %v730, 0.0
    %770 = vadd.xlane.f32.xlu0 %v769
    %v771 = vpop.xlane.xlu0 %770
    %v772 = vsel %vm648, %v732, 0.0
    %773 = vadd.xlane.f32.xlu0 %v772
    %v774 = vpop.xlane.xlu0 %773
    %v775 = vsel %vm648, %v734, 0.0
    %776 = vadd.xlane.f32.xlu0 %v775
    %v777 = vpop.xlane.xlu0 %776
    %v778 = vsel %vm648, %v736, 0.0
    %779 = vadd.xlane.f32.xlu0 %v778
    %v780 = vpop.xlane.xlu0 %779
    %v781 = vsel %vm648, %v738, 0.0
    %782 = vadd.xlane.f32.xlu0 %v781
    %v783 = vpop.xlane.xlu0 %782
    %v784 = vsel %vm648, %v740, 0.0
    %785 = vadd.xlane.f32.xlu0 %v784
    %v786 = vpop.xlane.xlu0 %785
    %v787 = vsel %vm648, %v742, 0.0
    %788 = vadd.xlane.f32.xlu0 %v787
    %v789 = vpop.xlane.xlu0 %788
    %v790 = vsel %vm648, %v744, 0.0
    %791 = vadd.xlane.f32.xlu0 %v790
    %v792 = vpop.xlane.xlu0 %791
    %v793 = vrcp.pop %v747
    %v794 = vmul.f32 1.0, %v793
    %v795 = vrcp.pop %v750
    %v796 = vmul.f32 1.0, %v795
    %v797 = vrcp.pop %v753
    %v798 = vmul.f32 1.0, %v797
    %v799 = vrcp.pop %v756
    %v800 = vmul.f32 1.0, %v799
    %v801 = vrcp.pop %v759
    %v802 = vmul.f32 1.0, %v801
    %v803 = vrcp.pop %v762
    %v804 = vmul.f32 1.0, %v803
    %v805 = vrcp.pop %v765
    %v806 = vmul.f32 1.0, %v805
    %v807 = vrcp.pop %v768
    %v808 = vmul.f32 1.0, %v807
    %v809 = vrcp.pop %v771
    %v810 = vmul.f32 1.0, %v809
    %v811 = vrcp.pop %v774
    %v812 = vmul.f32 1.0, %v811
    %v813 = vrcp.pop %v777
    %v814 = vmul.f32 1.0, %v813
    %v815 = vrcp.pop %v780
    %v816 = vmul.f32 1.0, %v815
    %v817 = vrcp.pop %v783
    %v818 = vmul.f32 1.0, %v817
    %v819 = vrcp.pop %v786
    %v820 = vmul.f32 1.0, %v819
    %v821 = vrcp.pop %v789
    %v822 = vmul.f32 1.0, %v821
    %v823 = vrcp.pop %v792
    %v824 = vmul.f32 1.0, %v823
    %v825 = vmul.f32 %v794, 0.125
    %v826 = vmul.f32 %v796, 0.125
    %v827 = vmul.f32 %v798, 0.125
    %v828 = vmul.f32 %v800, 0.125
    %v829 = vmul.f32 %v802, 0.125
    %v830 = vmul.f32 %v804, 0.125
    %v831 = vmul.f32 %v806, 0.125
    %v832 = vmul.f32 %v808, 0.125
    %v833 = vmul.f32 %v810, 0.125
    %v834 = vmul.f32 %v812, 0.125
    %v835 = vmul.f32 %v814, 0.125
    %v836 = vmul.f32 %v816, 0.125
    %v837 = vmul.f32 %v818, 0.125
    %v838 = vmul.f32 %v820, 0.125
    %v839 = vmul.f32 %v822, 0.125
    %v840 = vmul.f32 %v824, 0.125
    %841 = vrot.lane.b32.xlu0 %v206, 64
    %v842 = vpop.permute.xlu0 %841
    %v845 = vsel %vm648, %v714, 0
    %v848 = vsel %vm648, %v716, 0
    %v851 = vsel %vm648, %v718, 0
    %v854 = vsel %vm648, %v720, 0
    %856 = vmatprep.subr.mxu0 0.0
    %857 = vmatpush1.msra.mxu0 %v842
    %858 = vmatprep.subr.mxu0 0.0
    %859 = vmatpush1.msra.mxu0 0.0
    %860 = vmatprep.subr.mxu0 0.0
    %861 = vmatpush1.msra.mxu0 0.0
    %862 = vmatprep.subr.mxu0 0.0
    %863 = vmatpush1.msra.mxu0 0.0
    %864 = vmatprep.subr.mxu0 0.0
    %865 = vmatpush1.msra.mxu0 0.0
    %866 = vmatprep.subr.mxu0 0.0
    %867 = vmatpush1.msra.mxu0 0.0
    %868 = vmatprep.subr.mxu0 0.0
    %869 = vmatpush1.msra.mxu0 0.0
    %870 = vmatprep.subr.mxu0 0.0
    %871 = vmatpush1.msra.mxu0 0.0
    %872 = vmatprep.subr.mxu0 0.0
    %873 = vmatpush1.msra.mxu0 0.0
    %874 = vmatprep.subr.mxu0 0.0
    %875 = vmatpush1.msra.mxu0 0.0
    %876 = vmatprep.subr.mxu0 0.0
    %877 = vmatpush1.msra.mxu0 0.0
    %878 = vmatprep.subr.mxu0 0.0
    %879 = vmatpush1.msra.mxu0 0.0
    %880 = vmatprep.subr.mxu0 0.0
    %881 = vmatpush1.msra.mxu0 0.0
    %882 = vmatprep.subr.mxu0 0.0
    %883 = vmatpush1.msra.mxu0 0.0
    %884 = vmatprep.subr.mxu0 0.0
    %885 = vmatpush1.msra.mxu0 0.0
    %886 = vmatprep.subr.mxu0 0.0
    %887 = vmatpush1.msra.mxu0 0.0
    %888 = vmatprep.subr.mxu0 0.0
    %889 = vmatpush1.msra.mxu0 0.0
    %890 = vmatprep.subr.mxu0 0.0
    %891 = vmatpush1.msra.mxu0 0.0
    %892 = vmatprep.subr.mxu0 0.0
    %893 = vmatpush1.msra.mxu0 0.0
    %894 = vmatprep.subr.mxu0 0.0
    %895 = vmatpush1.msra.mxu0 0.0
    %896 = vmatprep.subr.mxu0 0.0
    %897 = vmatpush1.msra.mxu0 0.0
    %898 = vmatprep.subr.mxu0 0.0
    %899 = vmatpush1.msra.mxu0 0.0
    %900 = vmatprep.subr.mxu0 0.0
    %901 = vmatpush1.msra.mxu0 0.0
    %902 = vmatprep.subr.mxu0 0.0
    %903 = vmatpush1.msra.mxu0 0.0
    %904 = vmatprep.subr.mxu0 0.0
    %905 = vmatpush1.msra.mxu0 0.0
    %906 = vmatprep.subr.mxu0 0.0
    %907 = vmatpush1.msra.mxu0 0.0
    %908 = vmatprep.subr.mxu0 0.0
    %909 = vmatpush1.msra.mxu0 0.0
    %910 = vmatprep.subr.mxu0 0.0
    %911 = vmatpush1.msra.mxu0 0.0
    %912 = vmatprep.subr.mxu0 0.0
    %913 = vmatpush1.msra.mxu0 0.0
    %914 = vmatprep.subr.mxu0 0.0
    %915 = vmatpush1.msra.mxu0 0.0
    %916 = vmatprep.subr.mxu0 0.0
    %917 = vmatpush1.msra.mxu0 0.0
    %918 = vmatprep.subr.mxu0 0.0
    %919 = vmatpush1.msra.mxu0 0.0
    %920 = vmatprep.mubr.f32.mxu0 0.0
    %921 = vmatmul.mubr.f32.gmra.mrb[0].mxu0 %v845
    %v922 = vpop.f32.mrb[0].mxu0
    %v923 = vadd.f32 0.0, %v922
    %v924 = vpop.f32.mrb[0].mxu0
    %925 = vmatprep.mubr.f32.mxu0 0.0
    %926 = vmatmul.mubr.f32.gmra.mrb[0].mxu0 %v848
    %v927 = vpop.f32.mrb[0].mxu0
    %v928 = vadd.f32 0.0, %v927
    %v929 = vpop.f32.mrb[0].mxu0
    %930 = vmatprep.mubr.f32.mxu0 0.0
    %931 = vmatmul.mubr.f32.gmra.mrb[0].mxu0 %v851
    %v932 = vpop.f32.mrb[0].mxu0
    %v933 = vadd.f32 0.0, %v932
    %v934 = vpop.f32.mrb[0].mxu0
    %935 = vmatprep.mubr.f32.mxu0 0.0
    %936 = vmatmul.mubr.f32.gmra.mrb[0].mxu0 %v854
    %v937 = vpop.f32.mrb[0].mxu0
    %v938 = vadd.f32 0.0, %v937
    %v939 = vpop.f32.mrb[0].mxu0
    %940 = vdwg.mxu0
    %941 = vrot.lane.b32.xlu0 %v211, 64
    %v942 = vpop.permute.xlu0 %941
    %v945 = vsel %vm648, %v722, 0
    %v948 = vsel %vm648, %v724, 0
    %v951 = vsel %vm648, %v726, 0
    %v954 = vsel %vm648, %v728, 0
    %956 = vmatprep.subr.mxu0 0.0
    %957 = vmatpush1.msra.mxu0 %v942
    %958 = vmatprep.subr.mxu0 0.0
    %959 = vmatpush1.msra.mxu0 0.0
    %960 = vmatprep.subr.mxu0 0.0
    %961 = vmatpush1.msra.mxu0 0.0
    %962 = vmatprep.subr.mxu0 0.0
    %963 = vmatpush1.msra.mxu0 0.0
    %964 = vmatprep.subr.mxu0 0.0
    %965 = vmatpush1.msra.mxu0 0.0
    %966 = vmatprep.subr.mxu0 0.0
    %967 = vmatpush1.msra.mxu0 0.0
    %968 = vmatprep.subr.mxu0 0.0
    %969 = vmatpush1.msra.mxu0 0.0
    %970 = vmatprep.subr.mxu0 0.0
    %971 = vmatpush1.msra.mxu0 0.0
    %972 = vmatprep.subr.mxu0 0.0
    %973 = vmatpush1.msra.mxu0 0.0
    %974 = vmatprep.subr.mxu0 0.0
    %975 = vmatpush1.msra.mxu0 0.0
    %976 = vmatprep.subr.mxu0 0.0
    %977 = vmatpush1.msra.mxu0 0.0
    %978 = vmatprep.subr.mxu0 0.0
    %979 = vmatpush1.msra.mxu0 0.0
    %980 = vmatprep.subr.mxu0 0.0
    %981 = vmatpush1.msra.mxu0 0.0
    %982 = vmatprep.subr.mxu0 0.0
    %983 = vmatpush1.msra.mxu0 0.0
    %984 = vmatprep.subr.mxu0 0.0
    %985 = vmatpush1.msra.mxu0 0.0
    %986 = vmatprep.subr.mxu0 0.0
    %987 = vmatpush1.msra.mxu0 0.0
    %988 = vmatprep.subr.mxu0 0.0
    %989 = vmatpush1.msra.mxu0 0.0
    %990 = vmatprep.subr.mxu0 0.0
    %991 = vmatpush1.msra.mxu0 0.0
    %992 = vmatprep.subr.mxu0 0.0
    %993 = vmatpush1.msra.mxu0 0.0
    %994 = vmatprep.subr.mxu0 0.0
    %995 = vmatpush1.msra.mxu0 0.0
    %996 = vmatprep.subr.mxu0 0.0
    %997 = vmatpush1.msra.mxu0 0.0
    %998 = vmatprep.subr.mxu0 0.0
    %999 = vmatpush1.msra.mxu0 0.0
    %1000 = vmatprep.subr.mxu0 0.0
    %1001 = vmatpush1.msra.mxu0 0.0
    %1002 = vmatprep.subr.mxu0 0.0
    %1003 = vmatpush1.msra.mxu0 0.0
    %1004 = vmatprep.subr.mxu0 0.0
    %1005 = vmatpush1.msra.mxu0 0.0
    %1006 = vmatprep.subr.mxu0 0.0
    %1007 = vmatpush1.msra.mxu0 0.0
    %1008 = vmatprep.subr.mxu0 0.0
    %1009 = vmatpush1.msra.mxu0 0.0
    %1010 = vmatprep.subr.mxu0 0.0
    %1011 = vmatpush1.msra.mxu0 0.0
    %1012 = vmatprep.subr.mxu0 0.0
    %1013 = vmatpush1.msra.mxu0 0.0
    %1014 = vmatprep.subr.mxu0 0.0
    %1015 = vmatpush1.msra.mxu0 0.0
    %1016 = vmatprep.subr.mxu0 0.0
    %1017 = vmatpush1.msra.mxu0 0.0
    %1018 = vmatprep.subr.mxu0 0.0
    %1019 = vmatpush1.msra.mxu0 0.0
    %1020 = vmatprep.mubr.f32.mxu0 0.0
    %1021 = vmatmul.mubr.f32.gmra.mrb[0].mxu0 %v945
    %v1022 = vpop.f32.mrb[0].mxu0
    %v1023 = vadd.f32 0.0, %v1022
    %v1024 = vpop.f32.mrb[0].mxu0
    %1025 = vmatprep.mubr.f32.mxu0 0.0
    %1026 = vmatmul.mubr.f32.gmra.mrb[0].mxu0 %v948
    %v1027 = vpop.f32.mrb[0].mxu0
    %v1028 = vadd.f32 0.0, %v1027
    %v1029 = vpop.f32.mrb[0].mxu0
    %1030 = vmatprep.mubr.f32.mxu0 0.0
    %1031 = vmatmul.mubr.f32.gmra.mrb[0].mxu0 %v951
    %v1032 = vpop.f32.mrb[0].mxu0
    %v1033 = vadd.f32 0.0, %v1032
    %v1034 = vpop.f32.mrb[0].mxu0
    %1035 = vmatprep.mubr.f32.mxu0 0.0
    %1036 = vmatmul.mubr.f32.gmra.mrb[0].mxu0 %v954
    %v1037 = vpop.f32.mrb[0].mxu0
    %v1038 = vadd.f32 0.0, %v1037
    %v1039 = vpop.f32.mrb[0].mxu0
    %1040 = vdwg.mxu0
    %1041 = vrot.lane.b32.xlu0 %v216, 64
    %v1042 = vpop.permute.xlu0 %1041
    %v1045 = vsel %vm648, %v730, 0
    %v1048 = vsel %vm648, %v732, 0
    %v1051 = vsel %vm648, %v734, 0
    %v1054 = vsel %vm648, %v736, 0
    %1056 = vmatprep.subr.mxu0 0.0
    %1057 = vmatpush1.msra.mxu0 %v1042
    %1058 = vmatprep.subr.mxu0 0.0
    %1059 = vmatpush1.msra.mxu0 0.0
    %1060 = vmatprep.subr.mxu0 0.0
    %1061 = vmatpush1.msra.mxu0 0.0
    %1062 = vmatprep.subr.mxu0 0.0
    %1063 = vmatpush1.msra.mxu0 0.0
    %1064 = vmatprep.subr.mxu0 0.0
    %1065 = vmatpush1.msra.mxu0 0.0
    %1066 = vmatprep.subr.mxu0 0.0
    %1067 = vmatpush1.msra.mxu0 0.0
    %1068 = vmatprep.subr.mxu0 0.0
    %1069 = vmatpush1.msra.mxu0 0.0
    %1070 = vmatprep.subr.mxu0 0.0
    %1071 = vmatpush1.msra.mxu0 0.0
    %1072 = vmatprep.subr.mxu0 0.0
    %1073 = vmatpush1.msra.mxu0 0.0
    %1074 = vmatprep.subr.mxu0 0.0
    %1075 = vmatpush1.msra.mxu0 0.0
    %1076 = vmatprep.subr.mxu0 0.0
    %1077 = vmatpush1.msra.mxu0 0.0
    %1078 = vmatprep.subr.mxu0 0.0
    %1079 = vmatpush1.msra.mxu0 0.0
    %1080 = vmatprep.subr.mxu0 0.0
    %1081 = vmatpush1.msra.mxu0 0.0
    %1082 = vmatprep.subr.mxu0 0.0
    %1083 = vmatpush1.msra.mxu0 0.0
    %1084 = vmatprep.subr.mxu0 0.0
    %1085 = vmatpush1.msra.mxu0 0.0
    %1086 = vmatprep.subr.mxu0 0.0
    %1087 = vmatpush1.msra.mxu0 0.0
    %1088 = vmatprep.subr.mxu0 0.0
    %1089 = vmatpush1.msra.mxu0 0.0
    %1090 = vmatprep.subr.mxu0 0.0
    %1091 = vmatpush1.msra.mxu0 0.0
    %1092 = vmatprep.subr.mxu0 0.0
    %1093 = vmatpush1.msra.mxu0 0.0
    %1094 = vmatprep.subr.mxu0 0.0
    %1095 = vmatpush1.msra.mxu0 0.0
    %1096 = vmatprep.subr.mxu0 0.0
    %1097 = vmatpush1.msra.mxu0 0.0
    %1098 = vmatprep.subr.mxu0 0.0
    %1099 = vmatpush1.msra.mxu0 0.0
    %1100 = vmatprep.subr.mxu0 0.0
    %1101 = vmatpush1.msra.mxu0 0.0
    %1102 = vmatprep.subr.mxu0 0.0
    %1103 = vmatpush1.msra.mxu0 0.0
    %1104 = vmatprep.subr.mxu0 0.0
    %1105 = vmatpush1.msra.mxu0 0.0
    %1106 = vmatprep.subr.mxu0 0.0
    %1107 = vmatpush1.msra.mxu0 0.0
    %1108 = vmatprep.subr.mxu0 0.0
    %1109 = vmatpush1.msra.mxu0 0.0
    %1110 = vmatprep.subr.mxu0 0.0
    %1111 = vmatpush1.msra.mxu0 0.0
    %1112 = vmatprep.subr.mxu0 0.0
    %1113 = vmatpush1.msra.mxu0 0.0
    %1114 = vmatprep.subr.mxu0 0.0
    %1115 = vmatpush1.msra.mxu0 0.0
    %1116 = vmatprep.subr.mxu0 0.0
    %1117 = vmatpush1.msra.mxu0 0.0
    %1118 = vmatprep.subr.mxu0 0.0
    %1119 = vmatpush1.msra.mxu0 0.0
    %1120 = vmatprep.mubr.f32.mxu0 0.0
    %1121 = vmatmul.mubr.f32.gmra.mrb[0].mxu0 %v1045
    %v1122 = vpop.f32.mrb[0].mxu0
    %v1123 = vadd.f32 0.0, %v1122
    %v1124 = vpop.f32.mrb[0].mxu0
    %1125 = vmatprep.mubr.f32.mxu0 0.0
    %1126 = vmatmul.mubr.f32.gmra.mrb[0].mxu0 %v1048
    %v1127 = vpop.f32.mrb[0].mxu0
    %v1128 = vadd.f32 0.0, %v1127
    %v1129 = vpop.f32.mrb[0].mxu0
    %1130 = vmatprep.mubr.f32.mxu0 0.0
    %1131 = vmatmul.mubr.f32.gmra.mrb[0].mxu0 %v1051
    %v1132 = vpop.f32.mrb[0].mxu0
    %v1133 = vadd.f32 0.0, %v1132
    %v1134 = vpop.f32.mrb[0].mxu0
    %1135 = vmatprep.mubr.f32.mxu0 0.0
    %1136 = vmatmul.mubr.f32.gmra.mrb[0].mxu0 %v1054
    %v1137 = vpop.f32.mrb[0].mxu0
    %v1138 = vadd.f32 0.0, %v1137
    %v1139 = vpop.f32.mrb[0].mxu0
    %1140 = vdwg.mxu0
    %1141 = vrot.lane.b32.xlu0 %v221, 64
    %v1142 = vpop.permute.xlu0 %1141
    %v1145 = vsel %vm648, %v738, 0
    %v1148 = vsel %vm648, %v740, 0
    %v1151 = vsel %vm648, %v742, 0
    %v1154 = vsel %vm648, %v744, 0
    %1156 = vmatprep.subr.mxu0 0.0
    %1157 = vmatpush1.msra.mxu0 %v1142
    %1158 = vmatprep.subr.mxu0 0.0
    %1159 = vmatpush1.msra.mxu0 0.0
    %1160 = vmatprep.subr.mxu0 0.0
    %1161 = vmatpush1.msra.mxu0 0.0
    %1162 = vmatprep.subr.mxu0 0.0
    %1163 = vmatpush1.msra.mxu0 0.0
    %1164 = vmatprep.subr.mxu0 0.0
    %1165 = vmatpush1.msra.mxu0 0.0
    %1166 = vmatprep.subr.mxu0 0.0
    %1167 = vmatpush1.msra.mxu0 0.0
    %1168 = vmatprep.subr.mxu0 0.0
    %1169 = vmatpush1.msra.mxu0 0.0
    %1170 = vmatprep.subr.mxu0 0.0
    %1171 = vmatpush1.msra.mxu0 0.0
    %1172 = vmatprep.subr.mxu0 0.0
    %1173 = vmatpush1.msra.mxu0 0.0
    %1174 = vmatprep.subr.mxu0 0.0
    %1175 = vmatpush1.msra.mxu0 0.0
    %1176 = vmatprep.subr.mxu0 0.0
    %1177 = vmatpush1.msra.mxu0 0.0
    %1178 = vmatprep.subr.mxu0 0.0
    %1179 = vmatpush1.msra.mxu0 0.0
    %1180 = vmatprep.subr.mxu0 0.0
    %1181 = vmatpush1.msra.mxu0 0.0
    %1182 = vmatprep.subr.mxu0 0.0
    %1183 = vmatpush1.msra.mxu0 0.0
    %1184 = vmatprep.subr.mxu0 0.0
    %1185 = vmatpush1.msra.mxu0 0.0
    %1186 = vmatprep.subr.mxu0 0.0
    %1187 = vmatpush1.msra.mxu0 0.0
    %1188 = vmatprep.subr.mxu0 0.0
    %1189 = vmatpush1.msra.mxu0 0.0
    %1190 = vmatprep.subr.mxu0 0.0
    %1191 = vmatpush1.msra.mxu0 0.0
    %1192 = vmatprep.subr.mxu0 0.0
    %1193 = vmatpush1.msra.mxu0 0.0
    %1194 = vmatprep.subr.mxu0 0.0
    %1195 = vmatpush1.msra.mxu0 0.0
    %1196 = vmatprep.subr.mxu0 0.0
    %1197 = vmatpush1.msra.mxu0 0.0
    %1198 = vmatprep.subr.mxu0 0.0
    %1199 = vmatpush1.msra.mxu0 0.0
    %1200 = vmatprep.subr.mxu0 0.0
    %1201 = vmatpush1.msra.mxu0 0.0
    %1202 = vmatprep.subr.mxu0 0.0
    %1203 = vmatpush1.msra.mxu0 0.0
    %1204 = vmatprep.subr.mxu0 0.0
    %1205 = vmatpush1.msra.mxu0 0.0
    %1206 = vmatprep.subr.mxu0 0.0
    %1207 = vmatpush1.msra.mxu0 0.0
    %1208 = vmatprep.subr.mxu0 0.0
    %1209 = vmatpush1.msra.mxu0 0.0
    %1210 = vmatprep.subr.mxu0 0.0
    %1211 = vmatpush1.msra.mxu0 0.0
    %1212 = vmatprep.subr.mxu0 0.0
    %1213 = vmatpush1.msra.mxu0 0.0
    %1214 = vmatprep.subr.mxu0 0.0
    %1215 = vmatpush1.msra.mxu0 0.0
    %1216 = vmatprep.subr.mxu0 0.0
    %1217 = vmatpush1.msra.mxu0 0.0
    %1218 = vmatprep.subr.mxu0 0.0
    %1219 = vmatpush1.msra.mxu0 0.0
    %1220 = vmatprep.mubr.f32.mxu0 0.0
    %1221 = vmatmul.mubr.f32.gmra.mrb[0].mxu0 %v1145
    %v1222 = vpop.f32.mrb[0].mxu0
    %v1223 = vadd.f32 0.0, %v1222
    %v1224 = vpop.f32.mrb[0].mxu0
    %1225 = vmatprep.mubr.f32.mxu0 0.0
    %1226 = vmatmul.mubr.f32.gmra.mrb[0].mxu0 %v1148
    %v1227 = vpop.f32.mrb[0].mxu0
    %v1228 = vadd.f32 0.0, %v1227
    %v1229 = vpop.f32.mrb[0].mxu0
    %1230 = vmatprep.mubr.f32.mxu0 0.0
    %1231 = vmatmul.mubr.f32.gmra.mrb[0].mxu0 %v1151
    %v1232 = vpop.f32.mrb[0].mxu0
    %v1233 = vadd.f32 0.0, %v1232
    %v1234 = vpop.f32.mrb[0].mxu0
    %1235 = vmatprep.mubr.f32.mxu0 0.0
    %1236 = vmatmul.mubr.f32.gmra.mrb[0].mxu0 %v1154
    %v1237 = vpop.f32.mrb[0].mxu0
    %v1238 = vadd.f32 0.0, %v1237
    %v1239 = vpop.f32.mrb[0].mxu0
    %1240 = vdwg.mxu0
    %v1241 = vmul.f32 %v923, %v825
    %v1242 = vmul.f32 %v928, %v826
    %v1243 = vmul.f32 %v933, %v827
    %v1244 = vmul.f32 %v938, %v828
    %v1245 = vmul.f32 %v1023, %v829
    %v1246 = vmul.f32 %v1028, %v830
    %v1247 = vmul.f32 %v1033, %v831
    %v1248 = vmul.f32 %v1038, %v832
    %v1249 = vmul.f32 %v1123, %v833
    %v1250 = vmul.f32 %v1128, %v834
    %v1251 = vmul.f32 %v1133, %v835
    %v1252 = vmul.f32 %v1138, %v836
    %v1253 = vmul.f32 %v1223, %v837
    %v1254 = vmul.f32 %v1228, %v838
    %v1255 = vmul.f32 %v1233, %v839
    %v1256 = vmul.f32 %v1238, %v840
    %v1257 = vmul.f32 %v1241, %v110
    %v1258 = vmul.f32 %v1242, %v111
    %v1259 = vmul.f32 %v1243, %v112
    %v1260 = vmul.f32 %v1244, %v113
    %v1261 = vmul.f32 %v1245, %v110
    %v1262 = vmul.f32 %v1246, %v111
    %v1263 = vmul.f32 %v1247, %v112
    %v1264 = vmul.f32 %v1248, %v113
    %v1265 = vmul.f32 %v1249, %v110
    %v1266 = vmul.f32 %v1250, %v111
    %v1267 = vmul.f32 %v1251, %v112
    %v1268 = vmul.f32 %v1252, %v113
    %v1269 = vmul.f32 %v1253, %v110
    %v1270 = vmul.f32 %v1254, %v111
    %v1271 = vmul.f32 %v1255, %v112
    %v1272 = vmul.f32 %v1256, %v113
    %v1273 = vsel %vm126, %v1257, 0.0
    %v1274 = vsel %vm126, %v1258, 0.0
    %v1275 = vadd.f32 %v1273, %v1274
    %v1276 = vsel %vm126, %v1259, 0.0
    %v1277 = vadd.f32 %v1275, %v1276
    %v1278 = vsel %vm126, %v1260, 0.0
    %v1279 = vadd.f32 %v1277, %v1278
    %v1280 = vrot.slane %v1279, 4
    %v1281 = vadd.f32 %v1279, %v1280
    %v1282 = vrot.slane %v1281, 2
    %v1283 = vadd.f32 %v1281, %v1282
    %v1284 = vrot.slane %v1283, 1
    %v1285 = vadd.f32 %v1283, %v1284
    %v1286 = vsel %vm126, %v1261, 0.0
    %v1287 = vsel %vm126, %v1262, 0.0
    %v1288 = vadd.f32 %v1286, %v1287
    %v1289 = vsel %vm126, %v1263, 0.0
    %v1290 = vadd.f32 %v1288, %v1289
    %v1291 = vsel %vm126, %v1264, 0.0
    %v1292 = vadd.f32 %v1290, %v1291
    %v1293 = vrot.slane %v1292, 4
    %v1294 = vadd.f32 %v1292, %v1293
    %v1295 = vrot.slane %v1294, 2
    %v1296 = vadd.f32 %v1294, %v1295
    %v1297 = vrot.slane %v1296, 1
    %v1298 = vadd.f32 %v1296, %v1297
    %v1299 = vsel %vm126, %v1265, 0.0
    %v1300 = vsel %vm126, %v1266, 0.0
    %v1301 = vadd.f32 %v1299, %v1300
    %v1302 = vsel %vm126, %v1267, 0.0
    %v1303 = vadd.f32 %v1301, %v1302
    %v1304 = vsel %vm126, %v1268, 0.0
    %v1305 = vadd.f32 %v1303, %v1304
    %v1306 = vrot.slane %v1305, 4
    %v1307 = vadd.f32 %v1305, %v1306
    %v1308 = vrot.slane %v1307, 2
    %v1309 = vadd.f32 %v1307, %v1308
    %v1310 = vrot.slane %v1309, 1
    %v1311 = vadd.f32 %v1309, %v1310
    %v1312 = vsel %vm126, %v1269, 0.0
    %v1313 = vsel %vm126, %v1270, 0.0
    %v1314 = vadd.f32 %v1312, %v1313
    %v1315 = vsel %vm126, %v1271, 0.0
    %v1316 = vadd.f32 %v1314, %v1315
    %v1317 = vsel %vm126, %v1272, 0.0
    %v1318 = vadd.f32 %v1316, %v1317
    %v1319 = vrot.slane %v1318, 4
    %v1320 = vadd.f32 %v1318, %v1319
    %v1321 = vrot.slane %v1320, 2
    %v1322 = vadd.f32 %v1320, %v1321
    %v1323 = vrot.slane %v1322, 1
    %v1324 = vadd.f32 %v1322, %v1323
    %v1325 = vld [vmem:[#allocation7] sm:$0xff]
    %v1326 = vld [vmem:[#allocation7 + $0x8] sm:$0xff]
    %v1327 = vld [vmem:[#allocation7 + $0x10] sm:$0xff]
    %v1328 = vld [vmem:[#allocation7 + $0x18] sm:$0xff]
    %v1329 = vlaneseq
    %v1330 = vshrl.u32 %v1329, 7
    %v1331 = vsub.s32 1, %v1330
    %v1332 = vrot.slane %v109, %v1331
    %vm1337 = vcmask 1041409
    %v1338 = vsel %vm1337, %v1298, %v1285
    %vm1339 = vcmask 1042434
    %v1340 = vsel %vm1339, %v1311, %v1338
    %vm1341 = vcmask 1043459
    %v1342 = vsel %vm1341, %v1324, %v1340
    %v1343 = vsel %vm126, %v1342, 0
    %1345 = vmatprep.subr.mxu0 0.0
    %1346 = vmatpush1.msra.mxu0 %v1325
    %1347 = vmatprep.subr.mxu0 0.0
    %1348 = vmatpush1.msra.mxu0 %v1326
    %1349 = vmatprep.subr.mxu0 0.0
    %1350 = vmatpush1.msra.mxu0 %v1327
    %1351 = vmatprep.subr.mxu0 0.0
    %1352 = vmatpush1.msra.mxu0 %v1328
    %1353 = vmatprep.subr.mxu0 0.0
    %1354 = vmatpush1.msra.mxu0 0.0
    %1355 = vmatprep.subr.mxu0 0.0
    %1356 = vmatpush1.msra.mxu0 0.0
    %1357 = vmatprep.subr.mxu0 0.0
    %1358 = vmatpush1.msra.mxu0 0.0
    %1359 = vmatprep.subr.mxu0 0.0
    %1360 = vmatpush1.msra.mxu0 0.0
    %1361 = vmatprep.subr.mxu0 0.0
    %1362 = vmatpush1.msra.mxu0 0.0
    %1363 = vmatprep.subr.mxu0 0.0
    %1364 = vmatpush1.msra.mxu0 0.0
    %1365 = vmatprep.subr.mxu0 0.0
    %1366 = vmatpush1.msra.mxu0 0.0
    %1367 = vmatprep.subr.mxu0 0.0
    %1368 = vmatpush1.msra.mxu0 0.0
    %1369 = vmatprep.subr.mxu0 0.0
    %1370 = vmatpush1.msra.mxu0 0.0
    %1371 = vmatprep.subr.mxu0 0.0
    %1372 = vmatpush1.msra.mxu0 0.0
    %1373 = vmatprep.subr.mxu0 0.0
    %1374 = vmatpush1.msra.mxu0 0.0
    %1375 = vmatprep.subr.mxu0 0.0
    %1376 = vmatpush1.msra.mxu0 0.0
    %1377 = vmatprep.subr.mxu0 0.0
    %1378 = vmatpush1.msra.mxu0 0.0
    %1379 = vmatprep.subr.mxu0 0.0
    %1380 = vmatpush1.msra.mxu0 0.0
    %1381 = vmatprep.subr.mxu0 0.0
    %1382 = vmatpush1.msra.mxu0 0.0
    %1383 = vmatprep.subr.mxu0 0.0
    %1384 = vmatpush1.msra.mxu0 0.0
    %1385 = vmatprep.subr.mxu0 0.0
    %1386 = vmatpush1.msra.mxu0 0.0
    %1387 = vmatprep.subr.mxu0 0.0
    %1388 = vmatpush1.msra.mxu0 0.0
    %1389 = vmatprep.subr.mxu0 0.0
    %1390 = vmatpush1.msra.mxu0 0.0
    %1391 = vmatprep.subr.mxu0 0.0
    %1392 = vmatpush1.msra.mxu0 0.0
    %1393 = vmatprep.subr.mxu0 0.0
    %1394 = vmatpush1.msra.mxu0 0.0
    %1395 = vmatprep.subr.mxu0 0.0
    %1396 = vmatpush1.msra.mxu0 0.0
    %1397 = vmatprep.subr.mxu0 0.0
    %1398 = vmatpush1.msra.mxu0 0.0
    %1399 = vmatprep.subr.mxu0 0.0
    %1400 = vmatpush1.msra.mxu0 0.0
    %1401 = vmatprep.subr.mxu0 0.0
    %1402 = vmatpush1.msra.mxu0 0.0
    %1403 = vmatprep.subr.mxu0 0.0
    %1404 = vmatpush1.msra.mxu0 0.0
    %1405 = vmatprep.subr.mxu0 0.0
    %1406 = vmatpush1.msra.mxu0 0.0
    %1407 = vmatprep.subr.mxu0 0.0
    %1408 = vmatpush1.msra.mxu0 0.0
    %1409 = vmatprep.mubr.f32.mxu0 0.0
    %1410 = vmatmul.mubr.f32.gmra.mrb[0].mxu0 %v1343
    %v1411 = vpop.f32.mrb[0].mxu0
    %v1412 = vadd.f32 %v1332, %v1411
    %v1413 = vpop.f32.mrb[0].mxu0
    %1414 = vdwg.mxu0
    %v1415 = vld [vmem:[#allocation8] sm:$0xff]
    %v1416 = vld [vmem:[#allocation8 + $0x8] sm:$0xff]
    %v1417 = vld [vmem:[#allocation8 + $0x10] sm:$0xff]
    %v1418 = vld [vmem:[#allocation8 + $0x18] sm:$0xff]
    %v1419 = vlaneseq
    %v1420 = vshrl.u32 %v1419, 7
    %v1421 = vsub.s32 2, %v1420
    %v1422 = vrot.slane %v109, %v1421
    %v1424 = vsel %vm126, %v1412, 0
    %1426 = vmatprep.subr.mxu0 0.0
    %1427 = vmatpush1.msra.mxu0 %v1415
    %1428 = vmatprep.subr.mxu0 0.0
    %1429 = vmatpush1.msra.mxu0 %v1416
    %1430 = vmatprep.subr.mxu0 0.0
    %1431 = vmatpush1.msra.mxu0 %v1417
    %1432 = vmatprep.subr.mxu0 0.0
    %1433 = vmatpush1.msra.mxu0 %v1418
    %1434 = vmatprep.subr.mxu0 0.0
    %1435 = vmatpush1.msra.mxu0 0.0
    %1436 = vmatprep.subr.mxu0 0.0
    %1437 = vmatpush1.msra.mxu0 0.0
    %1438 = vmatprep.subr.mxu0 0.0
    %1439 = vmatpush1.msra.mxu0 0.0
    %1440 = vmatprep.subr.mxu0 0.0
    %1441 = vmatpush1.msra.mxu0 0.0
    %1442 = vmatprep.subr.mxu0 0.0
    %1443 = vmatpush1.msra.mxu0 0.0
    %1444 = vmatprep.subr.mxu0 0.0
    %1445 = vmatpush1.msra.mxu0 0.0
    %1446 = vmatprep.subr.mxu0 0.0
    %1447 = vmatpush1.msra.mxu0 0.0
    %1448 = vmatprep.subr.mxu0 0.0
    %1449 = vmatpush1.msra.mxu0 0.0
    %1450 = vmatprep.subr.mxu0 0.0
    %1451 = vmatpush1.msra.mxu0 0.0
    %1452 = vmatprep.subr.mxu0 0.0
    %1453 = vmatpush1.msra.mxu0 0.0
    %1454 = vmatprep.subr.mxu0 0.0
    %1455 = vmatpush1.msra.mxu0 0.0
    %1456 = vmatprep.subr.mxu0 0.0
    %1457 = vmatpush1.msra.mxu0 0.0
    %1458 = vmatprep.subr.mxu0 0.0
    %1459 = vmatpush1.msra.mxu0 0.0
    %1460 = vmatprep.subr.mxu0 0.0
    %1461 = vmatpush1.msra.mxu0 0.0
    %1462 = vmatprep.subr.mxu0 0.0
    %1463 = vmatpush1.msra.mxu0 0.0
    %1464 = vmatprep.subr.mxu0 0.0
    %1465 = vmatpush1.msra.mxu0 0.0
    %1466 = vmatprep.subr.mxu0 0.0
    %1467 = vmatpush1.msra.mxu0 0.0
    %1468 = vmatprep.subr.mxu0 0.0
    %1469 = vmatpush1.msra.mxu0 0.0
    %1470 = vmatprep.subr.mxu0 0.0
    %1471 = vmatpush1.msra.mxu0 0.0
    %1472 = vmatprep.subr.mxu0 0.0
    %1473 = vmatpush1.msra.mxu0 0.0
    %1474 = vmatprep.subr.mxu0 0.0
    %1475 = vmatpush1.msra.mxu0 0.0
    %1476 = vmatprep.subr.mxu0 0.0
    %1477 = vmatpush1.msra.mxu0 0.0
    %1478 = vmatprep.subr.mxu0 0.0
    %1479 = vmatpush1.msra.mxu0 0.0
    %1480 = vmatprep.subr.mxu0 0.0
    %1481 = vmatpush1.msra.mxu0 0.0
    %1482 = vmatprep.subr.mxu0 0.0
    %1483 = vmatpush1.msra.mxu0 0.0
    %1484 = vmatprep.subr.mxu0 0.0
    %1485 = vmatpush1.msra.mxu0 0.0
    %1486 = vmatprep.subr.mxu0 0.0
    %1487 = vmatpush1.msra.mxu0 0.0
    %1488 = vmatprep.subr.mxu0 0.0
    %1489 = vmatpush1.msra.mxu0 0.0
    %1490 = vmatprep.mubr.f32.mxu0 0.0
    %1491 = vmatmul.mubr.f32.gmra.mrb[0].mxu0 %v1424
    %v1492 = vpop.f32.mrb[0].mxu0
    %v1493 = vadd.f32 %v1422, %v1492
    %v1494 = vpop.f32.mrb[0].mxu0
    %1495 = vdwg.mxu0
    %v1496 = vmax.f32 %v1493, 0.0
    %v1497 = vld [vmem:[#allocation10] sm:$0xff]
    %v1498 = vld [vmem:[#allocation10 + $0x8] sm:$0xff]
    %v1499 = vld [vmem:[#allocation10 + $0x10] sm:$0xff]
    %v1500 = vld [vmem:[#allocation10 + $0x18] sm:$0xff]
    %v1501 = vlaneseq
    %v1502 = vshrl.u32 %v1501, 7
    %v1503 = vsub.s32 3, %v1502
    %v1504 = vrot.slane %v109, %v1503
    %v1506 = vsel %vm126, %v1496, 0
    %1508 = vmatprep.subr.mxu0 0.0
    %1509 = vmatpush1.msra.mxu0 %v1497
    %1510 = vmatprep.subr.mxu0 0.0
    %1511 = vmatpush1.msra.mxu0 %v1498
    %1512 = vmatprep.subr.mxu0 0.0
    %1513 = vmatpush1.msra.mxu0 %v1499
    %1514 = vmatprep.subr.mxu0 0.0
    %1515 = vmatpush1.msra.mxu0 %v1500
    %1516 = vmatprep.subr.mxu0 0.0
    %1517 = vmatpush1.msra.mxu0 0.0
    %1518 = vmatprep.subr.mxu0 0.0
    %1519 = vmatpush1.msra.mxu0 0.0
    %1520 = vmatprep.subr.mxu0 0.0
    %1521 = vmatpush1.msra.mxu0 0.0
    %1522 = vmatprep.subr.mxu0 0.0
    %1523 = vmatpush1.msra.mxu0 0.0
    %1524 = vmatprep.subr.mxu0 0.0
    %1525 = vmatpush1.msra.mxu0 0.0
    %1526 = vmatprep.subr.mxu0 0.0
    %1527 = vmatpush1.msra.mxu0 0.0
    %1528 = vmatprep.subr.mxu0 0.0
    %1529 = vmatpush1.msra.mxu0 0.0
    %1530 = vmatprep.subr.mxu0 0.0
    %1531 = vmatpush1.msra.mxu0 0.0
    %1532 = vmatprep.subr.mxu0 0.0
    %1533 = vmatpush1.msra.mxu0 0.0
    %1534 = vmatprep.subr.mxu0 0.0
    %1535 = vmatpush1.msra.mxu0 0.0
    %1536 = vmatprep.subr.mxu0 0.0
    %1537 = vmatpush1.msra.mxu0 0.0
    %1538 = vmatprep.subr.mxu0 0.0
    %1539 = vmatpush1.msra.mxu0 0.0
    %1540 = vmatprep.subr.mxu0 0.0
    %1541 = vmatpush1.msra.mxu0 0.0
    %1542 = vmatprep.subr.mxu0 0.0
    %1543 = vmatpush1.msra.mxu0 0.0
    %1544 = vmatprep.subr.mxu0 0.0
    %1545 = vmatpush1.msra.mxu0 0.0
    %1546 = vmatprep.subr.mxu0 0.0
    %1547 = vmatpush1.msra.mxu0 0.0
    %1548 = vmatprep.subr.mxu0 0.0
    %1549 = vmatpush1.msra.mxu0 0.0
    %1550 = vmatprep.subr.mxu0 0.0
    %1551 = vmatpush1.msra.mxu0 0.0
    %1552 = vmatprep.subr.mxu0 0.0
    %1553 = vmatpush1.msra.mxu0 0.0
    %1554 = vmatprep.subr.mxu0 0.0
    %1555 = vmatpush1.msra.mxu0 0.0
    %1556 = vmatprep.subr.mxu0 0.0
    %1557 = vmatpush1.msra.mxu0 0.0
    %1558 = vmatprep.subr.mxu0 0.0
    %1559 = vmatpush1.msra.mxu0 0.0
    %1560 = vmatprep.subr.mxu0 0.0
    %1561 = vmatpush1.msra.mxu0 0.0
    %1562 = vmatprep.subr.mxu0 0.0
    %1563 = vmatpush1.msra.mxu0 0.0
    %1564 = vmatprep.subr.mxu0 0.0
    %1565 = vmatpush1.msra.mxu0 0.0
    %1566 = vmatprep.subr.mxu0 0.0
    %1567 = vmatpush1.msra.mxu0 0.0
    %1568 = vmatprep.subr.mxu0 0.0
    %1569 = vmatpush1.msra.mxu0 0.0
    %1570 = vmatprep.subr.mxu0 0.0
    %1571 = vmatpush1.msra.mxu0 0.0
    %1572 = vmatprep.mubr.f32.mxu0 0.0
    %1573 = vmatmul.mubr.f32.gmra.mrb[0].mxu0 %v1506
    %v1574 = vpop.f32.mrb[0].mxu0
    %v1575 = vadd.f32 %v1504, %v1574
    %v1576 = vpop.f32.mrb[0].mxu0
    %1577 = vdwg.mxu0
    %vm1578 = vcmask 257024
    %v1579 = vsel %vm1578, %v1575, 0.0
    %1580 = vadd.xlane.f32.xlu0 %v1579
    %v1581 = vpop.xlane.xlu0 %1580
    %v1582 = vrcp.pop 32.0
    %v1583 = vmul.f32 %v1581, %v1582
    %v1584 = vsub.f32 %v1575, %v1583
    %v1585 = vmul.f32 %v1584, %v1584
    %v1586 = vsel %vm1578, %v1585, 0.0
    %1587 = vadd.xlane.f32.xlu0 %v1586
    %v1588 = vpop.xlane.xlu0 %1587
    %v1589 = vmul.f32 %v1588, %v1582
    %v1590 = vadd.f32 %v1589, 1e-05
    %v1591 = vrsqrt.pop %v1590
    %v1592 = vmul.f32 %v1584, %v1591
    %v1593 = vlaneseq
    %v1594 = vshrl.u32 %v1593, 7
    %v1595 = vsub.s32 4, %v1594
    %v1596 = vrot.slane %v109, %v1595
    %v1597 = vmul.f32 %v1592, %v1596
    %v1598 = vlaneseq
    %v1599 = vshrl.u32 %v1598, 7
    %v1600 = vsub.s32 5, %v1599
    %v1601 = vrot.slane %v109, %v1600
    %v1602 = vadd.f32 %v1597, %v1601
    %1603 = vst.msk [vmem:[#allocation13] sm:$0xf] %vm1578, %v1602
    // Predicated region
    $region54: #{tpu_custom_call.1} parent=1 // pred_check
      _
    $region55: #{tpu_custom_call.1} parent=1 // pred_check_branch
      %1605 = sbr.rel (0) target = $region57
    $region56: #{tpu_custom_call.1} parent=1 // pred_region
      %s1607 = ssub.s32 64, 64
      %1608 = vsyncadd [#allocation4], %s1607
      %s1610 = sshll.u32 [#allocation13], 4
      %s1611 = int_to_ptr.vmem [resolvable:$true] %s1610
      %1613 = dma.vmem_to_hbm [thread:$0]  %s1611, 64, %s7, [#allocation4]
    $region57: #{tpu_custom_call.1} parent=1 // pred_fallthru
      _
    // Predicated region
    $region58: #{tpu_custom_call.1} parent=1 // pred_check
      _
    $region59: #{tpu_custom_call.1} parent=1 // pred_check_branch
      %1615 = sbr.rel (0) target = $region61
    $region60: #{tpu_custom_call.1} parent=1 // pred_region
      %1616 = dma.done [#allocation4], 64
    $region61: #{tpu_custom_call.1} parent=1 // pred_fallthru
      _
    %1617 = vsyncpa [#allocation3], 1
    %1618 = vsyncpa [#allocation6], 1
    %1619 = vsyncpa [#allocation9], 1
    %1620 = vsyncpa [#allocation12], 1
    %1621 = vsyncpa [#allocation4], 1

</llo_original>
